<compile_context>
chip_gen: v6e
topology: v6e:2x2x1
jax: 0.10.0
libtpu: 0.0.40
codegen_flags: <defaults>
</compile_context>

<pallas_src>
import functools

import jax
import jax.numpy as jnp
from jax.experimental import pallas as pl
from jax.experimental.pallas import tpu as pltpu

PAD = 0
LN_EPS = 1e-5     # PyTorch nn.LayerNorm default
NEG_INF = -1e9    # additive key-pad bias (avoids NaN on fully-padded query rows)


def _layer_norm(x, gamma, beta):
    mu = jnp.mean(x, axis=-1, keepdims=True)
    var = jnp.mean((x - mu) ** 2, axis=-1, keepdims=True)
    return (x - mu) * jax.lax.rsqrt(var + LN_EPS) * gamma + beta


def encoder_stack_kernel(x_ref, kbias_ref, npad_ref,
                         wqkv_ref, bqkv_ref, wo_ref, bo_ref,
                         ln1g_ref, ln1b_ref,
                         w1_ref, c1b_ref, w2_ref, c2b_ref,
                         ln2g_ref, ln2b_ref,
                         out_ref,
                         pad_ref,
                         *, n_head, d_k, d_v, conv_k, conv_pad):
    layer = pl.program_id(1)

    # On the first layer of this batch tile, seed the VMEM-resident activation and
    # zero the conv halo rows of the padded scratch once (middle rows are
    # overwritten every layer; halo rows stay zero).
    @pl.when(layer == 0)
    def _():
        out_ref[...] = x_ref[...]
        pad_ref[...] = jnp.zeros_like(pad_ref)

    a = out_ref[...]                       # (Bt, S, D) f32 current activation
    Bt, S, D = a.shape
    af = a.reshape(Bt * S, D).astype(jnp.bfloat16)

    kbias = kbias_ref[...]                 # (Bt, 1, S) additive key-pad bias (0 / -1e9)
    npad = npad_ref[...]                   # (Bt, S, 1) non-pad mask

    # ---------------- multi-head self-attention ----------------
    # Fused Q|K|V projection: one wide bf16 MXU matmul, f32 accumulation.
    qkv = jnp.dot(af, wqkv_ref[0], preferred_element_type=jnp.float32) + bqkv_ref[0]
    qkv = qkv.reshape(Bt, S, 3 * n_head * d_k)

    def merge_heads(lo):
        # head slices stacked along the cheap leading axis -> (H*Bt, S, d), h-major
        return jnp.concatenate(
            [qkv[:, :, (lo + h) * d_k:(lo + h + 1) * d_k] for h in range(n_head)],
            axis=0)

    inv_temp = 1.0 / (float(d_k) ** 0.5)
    q = (merge_heads(0) * inv_temp).astype(jnp.bfloat16)   # scale hoisted into q
    k = merge_heads(n_head).astype(jnp.bfloat16)
    v = merge_heads(2 * n_head).astype(jnp.bfloat16)
    kbias_m = jnp.concatenate([kbias] * n_head, axis=0)     # (H*Bt, 1, S)

    # All heads in one batched matmul pair (softmax kept in f32).
    scores = jnp.einsum('bqd,bkd->bqk', q, k, preferred_element_type=jnp.float32)
    scores = scores + kbias_m
    scores = scores - jnp.max(scores, axis=-1, keepdims=True)
    e = jnp.exp(scores)
    # approx reciprocal on EUP: rows sum to 1 only to ~1e-3 relative tolerance.
    attn = e * pl.reciprocal(jnp.sum(e, axis=-1, keepdims=True), approx=True)
    ctx = jnp.einsum('bqk,bkd->bqd', attn.astype(jnp.bfloat16), v,
                     preferred_element_type=jnp.float32)    # (H*Bt, S, d_v)
    heads = jnp.concatenate([ctx[h * Bt:(h + 1) * Bt] for h in range(n_head)],
                            axis=-1)                         # (Bt, S, H*d_v)
    heads = heads.reshape(Bt * S, n_head * d_v).astype(jnp.bfloat16)

    # Single output projection over the full H*d_v contraction.
    attn_out = jnp.dot(heads, wo_ref[0],
                       preferred_element_type=jnp.float32) + bo_ref[0]
    attn_out = attn_out.reshape(Bt, S, D)

    y = _layer_norm(attn_out + a, ln1g_ref[0], ln1b_ref[0])
    y = y * npad                            # enc_output *= non_pad_mask

    # ------------- position-wise FFN (Conv1d K -> ReLU -> Conv1d 1) -------------
    residual = y
    # Write masked activation into the middle rows of the persistent padded
    # scratch (halo rows already zero), then K accumulated matmuls of contraction
    # D instead of a K*D im2col buffer.
    pad_ref[:, conv_pad:conv_pad + S, :] = y.astype(jnp.bfloat16)
    padded = pad_ref[...]                   # (Bt, S + 2p, D) bf16
    d_inner = w1_ref.shape[-1]
    h1 = jnp.zeros((Bt * S, d_inner), dtype=jnp.float32)
    for t in range(conv_k):                 # static small tap loop
        tap = padded[:, t:t + S, :].reshape(Bt * S, D)
        h1 = h1 + jnp.dot(tap, w1_ref[0, t], preferred_element_type=jnp.float32)
    h1 = jnp.maximum(h1 + c1b_ref[0], 0.0)
    h2 = jnp.dot(h1.astype(jnp.bfloat16), w2_ref[0],
                 preferred_element_type=jnp.float32) + c2b_ref[0]
    h2 = h2.reshape(Bt, S, D)

    z = _layer_norm(h2 + residual, ln2g_ref[0], ln2b_ref[0])
    out_ref[...] = z * npad                 # enc_output *= non_pad_mask
    # TODO(synk): dropout layers are identity here (eval-mode semantics).


def _choose_bt(B, S, max_rows=1024):
    """Largest divisor bt of B with bt*S <= max_rows, preferring B//bt even so the
    'parallel' batch-tile axis is a multiple of the 2 v7x TensorCores.
    (max_rows can be raised to ~2048 on v5e/v6e's 128 MiB VMEM, ~512 on v7x.)"""
    cands = [bt for bt in range(1, B + 1) if B % bt == 0 and bt * S <= max_rows]
    if not cands:
        return 1
    even = [bt for bt in cands if (B // bt) % 2 == 0]
    return max(even) if even else max(cands)


def encoder_stack(x, kbias, npad, w, *, n_head, d_k, d_v, conv_k, conv_pad, bt):
    assert d_k == d_v, "Encoder defines d_k == d_v == d_model // n_head"
    B, S, D = x.shape
    n_layers = w["wqkv"].shape[0]
    nb = B // bt

    def wspec(arr):
        n = arr.ndim
        return pl.BlockSpec((1,) + arr.shape[1:],
                            lambda b, l, _n=n: (l,) + (0,) * (_n - 1))

    kernel = functools.partial(encoder_stack_kernel, n_head=n_head, d_k=d_k,
                               d_v=d_v, conv_k=conv_k, conv_pad=conv_pad)
    return pl.pallas_call(
        kernel,
        out_shape=jax.ShapeDtypeStruct((B, S, D), jnp.float32),
        grid=(nb, n_layers),
        in_specs=[
            pl.BlockSpec((bt, S, D), lambda b, l: (b, 0, 0)),   # embeddings
            pl.BlockSpec((bt, 1, S), lambda b, l: (b, 0, 0)),   # additive key-pad bias
            pl.BlockSpec((bt, S, 1), lambda b, l: (b, 0, 0)),   # non-pad mask
            wspec(w["wqkv"]), wspec(w["bqkv"]),
            wspec(w["wo"]), wspec(w["bo"]),
            wspec(w["ln1_g"]), wspec(w["ln1_b"]),
            wspec(w["w1"]), wspec(w["c1_b"]),
            wspec(w["w2"]), wspec(w["c2_b"]),
            wspec(w["ln2_g"]), wspec(w["ln2_b"]),
        ],
        out_specs=pl.BlockSpec((bt, S, D), lambda b, l: (b, 0, 0)),
        scratch_shapes=[pltpu.VMEM((bt, S + 2 * conv_pad, D), jnp.bfloat16)],
        compiler_params=pltpu.CompilerParams(
            dimension_semantics=("parallel", "arbitrary"),
            vmem_limit_bytes=64 * 1024 * 1024),
    )(x, kbias, npad,
      w["wqkv"], w["bqkv"], w["wo"], w["bo"],
      w["ln1_g"], w["ln1_b"],
      w["w1"], w["c1_b"], w["w2"], w["c2_b"],
      w["ln2_g"], w["ln2_b"])


def encoder_forward(src_seq, src_pos, params, cfg):
    # --- masks + embedding gathers: glue in plain JAX ---
    non_pad_mask = (src_seq != PAD).astype(jnp.float32)[..., None]        # (B,S,1)
    key_pad_bias = jnp.where(src_seq == PAD, jnp.float32(NEG_INF),
                             jnp.float32(0.0))[:, None, :]                # (B,1,S)
    enc_output = (jnp.take(params["word_emb"], src_seq, axis=0)
                  + jnp.take(params["pos_emb"], src_pos, axis=0)).astype(jnp.float32)
    B, S, _ = enc_output.shape
    bt = _choose_bt(B, S)
    # --- fused FFTBlock stack: one Pallas kernel ---
    enc_output = encoder_stack(enc_output, key_pad_bias, non_pad_mask,
                               params["layers"],
                               n_head=cfg["n_head"], d_k=cfg["d_k"], d_v=cfg["d_v"],
                               conv_k=cfg["conv_k"], conv_pad=cfg["conv_pad"], bt=bt)
    return enc_output, non_pad_mask


def init_params(key, cfg):
    D, H = cfg["d_model"], cfg["n_head"]
    dk, dv = cfg["d_k"], cfg["d_v"]
    d_inner, K1, L = cfg["d_inner"], cfg["conv_k"], cfg["n_layers"]

    def nrm(k, shape, scale=0.1):
        return scale * jax.random.normal(k, shape, dtype=jnp.float32)

    keys = jax.random.split(key, 2 + L)
    word_emb = nrm(keys[0], (cfg["vocab_size"], D)).at[PAD].set(0.0)
    pos_emb = nrm(keys[1], (cfg["n_position"], D)).at[PAD].set(0.0)

    wqkv, wo, w1, w2 = [], [], [], []
    for i in range(L):
        lk = jax.random.split(keys[2 + i], 6)
        wq = nrm(lk[0], (D, H * dk))
        wk = nrm(lk[1], (D, H * dk))
        wv = nrm(lk[2], (D, H * dv))
        wqkv.append(jnp.concatenate([wq, wk, wv], axis=-1))   # fused Q|K|V
        wo.append(nrm(lk[3], (H * dv, D)))
        # Conv1d(K) weight stored tap-major (K, in, out) for the per-tap matmuls.
        w1.append(nrm(lk[4], (K1, D, d_inner)))
        w2.append(nrm(lk[5], (d_inner, D)))                   # Conv1d(1) weight

    bf16 = jnp.bfloat16   # matmul weights in bf16; biases / LN params stay f32
    layers = dict(
        wqkv=jnp.stack(wqkv).astype(bf16),
        bqkv=jnp.zeros((L, 1, H * (2 * dk + dv)), jnp.float32),
        wo=jnp.stack(wo).astype(bf16),
        bo=jnp.zeros((L, 1, D), jnp.float32),
        ln1_g=jnp.ones((L, 1, D), jnp.float32),
        ln1_b=jnp.zeros((L, 1, D), jnp.float32),
        w1=jnp.stack(w1).astype(bf16),
        c1_b=jnp.zeros((L, 1, d_inner), jnp.float32),
        w2=jnp.stack(w2).astype(bf16),
        c2_b=jnp.zeros((L, 1, D), jnp.float32),
        ln2_g=jnp.ones((L, 1, D), jnp.float32),
        ln2_b=jnp.zeros((L, 1, D), jnp.float32),
    )
    return dict(word_emb=word_emb, pos_emb=pos_emb, layers=layers)


if __name__ == "__main__":
    cfg = dict(
        max_seq_len=8, n_position=9, vocab_size=20,
        d_model=32, n_head=2, d_k=16, d_v=16,
        d_inner=64, n_layers=2,
        conv_k=9, conv_pad=4,  # standard FastSpeech fft_conv1d_kernel=(9,1), padding=(4,0)
    )
    # NOTE: for deployment configs keep d_model, n_head*d_v, d_inner multiples of 128
    # and bt*S a multiple of 8 for lane/sublane-dense layouts.

    key = jax.random.PRNGKey(0)
    pkey, skey = jax.random.split(key)
    params = init_params(pkey, cfg)

    B, S = 2, cfg["max_seq_len"]
    src_seq = jax.random.randint(skey, (B, S), 1, cfg["vocab_size"], dtype=jnp.int32)
    # second sequence padded on the last 2 positions to exercise the masks
    src_seq = src_seq.at[1, S - 2:].set(PAD)
    pos = jnp.arange(1, S + 1, dtype=jnp.int32)[None, :].repeat(B, axis=0)
    src_pos = jnp.where(src_seq != PAD, pos, 0)

    enc_out, non_pad_mask = encoder_forward(src_seq, src_pos, params, cfg)
    enc_out = jax.block_until_ready(enc_out)
    non_pad_mask = jax.block_until_ready(non_pad_mask)

    assert enc_out.shape == (B, S, cfg["d_model"])
    assert non_pad_mask.shape == (B, S, 1)
    assert bool(jnp.all(jnp.isfinite(enc_out)))
    # padded positions must be zeroed by the non-pad mask
    assert bool(jnp.all(jnp.abs(enc_out[1, S - 2:, :]) == 0.0))

    print("KERNEL_OK")
</pallas_src>

<mosaic_0001>
module attributes {stable_mosaic.version = 11 : i64} {
  func.func @encoder_stack_kernel(%arg0: i32, %arg1: i32, %arg2: memref<1x8x32xf32, #tpu.memory_space<vmem>>, %arg3: memref<1x1x8xf32, #tpu.memory_space<vmem>>, %arg4: memref<1x8x1xf32, #tpu.memory_space<vmem>>, %arg5: memref<1x32x96xbf16, #tpu.memory_space<vmem>>, %arg6: memref<1x1x96xf32, #tpu.memory_space<vmem>>, %arg7: memref<1x32x32xbf16, #tpu.memory_space<vmem>>, %arg8: memref<1x1x32xf32, #tpu.memory_space<vmem>>, %arg9: memref<1x1x32xf32, #tpu.memory_space<vmem>>, %arg10: memref<1x1x32xf32, #tpu.memory_space<vmem>>, %arg11: memref<1x9x32x64xbf16, #tpu.memory_space<vmem>>, %arg12: memref<1x1x64xf32, #tpu.memory_space<vmem>>, %arg13: memref<1x64x32xbf16, #tpu.memory_space<vmem>>, %arg14: memref<1x1x32xf32, #tpu.memory_space<vmem>>, %arg15: memref<1x1x32xf32, #tpu.memory_space<vmem>>, %arg16: memref<1x1x32xf32, #tpu.memory_space<vmem>>, %arg17: memref<1x8x32xf32, #tpu.memory_space<vmem>>, %arg18: memref<1x16x32xbf16, #tpu.memory_space<vmem>>) attributes {dimension_semantics = [#tpu.dimension_semantics<parallel>, #tpu.dimension_semantics<arbitrary>], iteration_bounds = array<i64: 2, 2>, scalar_prefetch = 0 : i64, scratch_operands = 1 : i64, tpu.core_type = #tpu.core_type<tc>, window_params = [{transform_indices = @transform_0, window_bounds = array<i64: 1, 8, 32>}, {transform_indices = @transform_1, window_bounds = array<i64: 1, 1, 8>}, {transform_indices = @transform_2, window_bounds = array<i64: 1, 8, 1>}, {transform_indices = @transform_3, window_bounds = array<i64: 1, 32, 96>}, {transform_indices = @transform_4, window_bounds = array<i64: 1, 1, 96>}, {transform_indices = @transform_5, window_bounds = array<i64: 1, 32, 32>}, {transform_indices = @transform_6, window_bounds = array<i64: 1, 1, 32>}, {transform_indices = @transform_7, window_bounds = array<i64: 1, 1, 32>}, {transform_indices = @transform_8, window_bounds = array<i64: 1, 1, 32>}, {transform_indices = @transform_9, window_bounds = array<i64: 1, 9, 32, 64>}, {transform_indices = @transform_10, window_bounds = array<i64: 1, 1, 64>}, {transform_indices = @transform_11, window_bounds = array<i64: 1, 64, 32>}, {transform_indices = @transform_12, window_bounds = array<i64: 1, 1, 32>}, {transform_indices = @transform_13, window_bounds = array<i64: 1, 1, 32>}, {transform_indices = @transform_14, window_bounds = array<i64: 1, 1, 32>}, {transform_indices = @transform_15, window_bounds = array<i64: 1, 8, 32>}]} {
    %c0_i32 = arith.constant 0 : i32
    %0 = arith.cmpi eq, %arg1, %c0_i32 : i32
    %1 = arith.extui %0 : i1 to i32
    %c0_i32_0 = arith.constant 0 : i32
    %2 = arith.cmpi ne, %1, %c0_i32_0 : i32
    scf.if %2 {
      %c0_107 = arith.constant 0 : index
      %c0_108 = arith.constant 0 : index
      %c0_109 = arith.constant 0 : index
      %195 = vector.load %arg2[%c0_107, %c0_108, %c0_109] : memref<1x8x32xf32, #tpu.memory_space<vmem>>, vector<1x8x32xf32>
      %c0_110 = arith.constant 0 : index
      %c0_111 = arith.constant 0 : index
      %c0_112 = arith.constant 0 : index
      %196 = vector.load %arg17[%c0_110, %c0_111, %c0_112] : memref<1x8x32xf32, #tpu.memory_space<vmem>>, vector<1x8x32xf32>
      tpu.vector_store %arg17[%c0_110, %c0_111, %c0_112], %195 {strides = array<i32>} : memref<1x8x32xf32, #tpu.memory_space<vmem>>, vector<1x8x32xf32>,
      %cst_113 = arith.constant 0.000000e+00 : bf16
      %197 = vector.broadcast %cst_113 : bf16 to vector<1x16x32xbf16>
      %c0_114 = arith.constant 0 : index
      %c0_115 = arith.constant 0 : index
      %c0_116 = arith.constant 0 : index
      %198 = vector.load %arg18[%c0_114, %c0_115, %c0_116] : memref<1x16x32xbf16, #tpu.memory_space<vmem>>, vector<1x16x32xbf16>
      tpu.vector_store %arg18[%c0_114, %c0_115, %c0_116], %197 {strides = array<i32>} : memref<1x16x32xbf16, #tpu.memory_space<vmem>>, vector<1x16x32xbf16>,
    } else {
    }
    %c0 = arith.constant 0 : index
    %c0_1 = arith.constant 0 : index
    %c0_2 = arith.constant 0 : index
    %3 = vector.load %arg17[%c0, %c0_1, %c0_2] : memref<1x8x32xf32, #tpu.memory_space<vmem>>, vector<1x8x32xf32>
    %4 = vector.shape_cast %3 : vector<1x8x32xf32> to vector<8x32xf32>
    %5 = arith.truncf %4 : vector<8x32xf32> to vector<8x32xbf16>
    %c0_3 = arith.constant 0 : index
    %c0_4 = arith.constant 0 : index
    %c0_5 = arith.constant 0 : index
    %6 = vector.load %arg3[%c0_3, %c0_4, %c0_5] : memref<1x1x8xf32, #tpu.memory_space<vmem>>, vector<1x1x8xf32>
    %c0_6 = arith.constant 0 : index
    %c0_7 = arith.constant 0 : index
    %c0_8 = arith.constant 0 : index
    %7 = vector.load %arg4[%c0_6, %c0_7, %c0_8] : memref<1x8x1xf32, #tpu.memory_space<vmem>>, vector<1x8x1xf32>
    %c0_9 = arith.constant 0 : index
    %c0_10 = arith.constant 0 : index
    %c0_11 = arith.constant 0 : index
    %8 = vector.load %arg5[%c0_9, %c0_10, %c0_11] : memref<1x32x96xbf16, #tpu.memory_space<vmem>>, vector<1x32x96xbf16>
    %9 = vector.shape_cast %8 : vector<1x32x96xbf16> to vector<32x96xbf16>
    %cst = arith.constant dense<0.000000e+00> : vector<8x96xf32>
    %10 = tpu.matmul %5, %9, %cst {dimension_numbers = #tpu.dot_dimension_numbers<[1], [0], [0], [1], [0, 0, 1, 1], [], []>} : vector<8x32xbf16>, vector<32x96xbf16>, vector<8x96xf32> -> vector<8x96xf32>
    %c0_12 = arith.constant 0 : index
    %c0_13 = arith.constant 0 : index
    %c0_14 = arith.constant 0 : index
    %11 = vector.load %arg6[%c0_12, %c0_13, %c0_14] : memref<1x1x96xf32, #tpu.memory_space<vmem>>, vector<1x1x96xf32>
    %12 = vector.shape_cast %11 : vector<1x1x96xf32> to vector<1x96xf32>
    %13 = vector.broadcast %12 : vector<1x96xf32> to vector<8x96xf32>
    %14 = arith.addf %10, %13 : vector<8x96xf32>
    %15 = vector.shape_cast %14 : vector<8x96xf32> to vector<1x8x96xf32>
    %16 = vector.extract_strided_slice %15 {offsets = [0, 0, 0], sizes = [1, 8, 16], strides = [1, 1, 1]} : vector<1x8x96xf32> to vector<1x8x16xf32>
    %17 = vector.extract_strided_slice %15 {offsets = [0, 0, 16], sizes = [1, 8, 16], strides = [1, 1, 1]} : vector<1x8x96xf32> to vector<1x8x16xf32>
    %18 = tpu.concatenate %16, %17 in 0 : vector<1x8x16xf32>, vector<1x8x16xf32> -> vector<2x8x16xf32>
    %cst_15 = arith.constant 2.500000e-01 : f32
    %19 = vector.broadcast %cst_15 : f32 to vector<2x8x16xf32>
    %20 = arith.mulf %18, %19 : vector<2x8x16xf32>
    %21 = arith.truncf %20 : vector<2x8x16xf32> to vector<2x8x16xbf16>
    %22 = vector.extract_strided_slice %15 {offsets = [0, 0, 32], sizes = [1, 8, 16], strides = [1, 1, 1]} : vector<1x8x96xf32> to vector<1x8x16xf32>
    %23 = vector.extract_strided_slice %15 {offsets = [0, 0, 48], sizes = [1, 8, 16], strides = [1, 1, 1]} : vector<1x8x96xf32> to vector<1x8x16xf32>
    %24 = tpu.concatenate %22, %23 in 0 : vector<1x8x16xf32>, vector<1x8x16xf32> -> vector<2x8x16xf32>
    %25 = arith.truncf %24 : vector<2x8x16xf32> to vector<2x8x16xbf16>
    %26 = vector.extract_strided_slice %15 {offsets = [0, 0, 64], sizes = [1, 8, 16], strides = [1, 1, 1]} : vector<1x8x96xf32> to vector<1x8x16xf32>
    %27 = vector.extract_strided_slice %15 {offsets = [0, 0, 80], sizes = [1, 8, 16], strides = [1, 1, 1]} : vector<1x8x96xf32> to vector<1x8x16xf32>
    %28 = tpu.concatenate %26, %27 in 0 : vector<1x8x16xf32>, vector<1x8x16xf32> -> vector<2x8x16xf32>
    %29 = arith.truncf %28 : vector<2x8x16xf32> to vector<2x8x16xbf16>
    %30 = tpu.concatenate %6, %6 in 0 : vector<1x1x8xf32>, vector<1x1x8xf32> -> vector<2x1x8xf32>
    "tpu.trace_start"() <{level = 10 : i32, message = "bqd,bkd->bqk"}> : () -> ()
    %cst_16 = arith.constant dense<0.000000e+00> : vector<2x8x8xf32>
    %31 = tpu.matmul %21, %25, %cst_16 {dimension_numbers = #tpu.dot_dimension_numbers<[2], [2], [1], [1], [0, 0, 0, 1, 1, 1], [0], [0]>} : vector<2x8x16xbf16>, vector<2x8x16xbf16>, vector<2x8x8xf32> -> vector<2x8x8xf32>
    "tpu.trace_stop"() : () -> ()
    %32 = vector.broadcast %30 : vector<2x1x8xf32> to vector<2x8x8xf32>
    %33 = arith.addf %31, %32 : vector<2x8x8xf32>
    %cst_17 = arith.constant dense<0xFF800000> : vector<2x8xf32>
    %34 = vector.multi_reduction <maximumf>, %33, %cst_17 [2] : vector<2x8x8xf32> to vector<2x8xf32>
    %35 = vector.shape_cast %34 : vector<2x8xf32> to vector<2x8x1xf32>
    %36 = vector.broadcast %35 : vector<2x8x1xf32> to vector<2x8x8xf32>
    %37 = arith.subf %33, %36 : vector<2x8x8xf32>
    %38 = math.exp %37 : vector<2x8x8xf32>
    %cst_18 = arith.constant dense<0.000000e+00> : vector<2x8xf32>
    %39 = vector.multi_reduction <add>, %38, %cst_18 [2] : vector<2x8x8xf32> to vector<2x8xf32>
    %40 = vector.shape_cast %39 : vector<2x8xf32> to vector<2x8x1xf32>
    %41 = tpu.reciprocal %40 {approx = true} : vector<2x8x1xf32> -> vector<2x8x1xf32>
    %42 = vector.broadcast %41 : vector<2x8x1xf32> to vector<2x8x8xf32>
    %43 = arith.mulf %38, %42 : vector<2x8x8xf32>
    %44 = arith.truncf %43 : vector<2x8x8xf32> to vector<2x8x8xbf16>
    "tpu.trace_start"() <{level = 10 : i32, message = "bqk,bkd->bqd"}> : () -> ()
    %cst_19 = arith.constant dense<0.000000e+00> : vector<2x8x16xf32>
    %45 = tpu.matmul %44, %29, %cst_19 {dimension_numbers = #tpu.dot_dimension_numbers<[2], [1], [1], [2], [0, 0, 0, 1, 1, 2], [0], [0]>} : vector<2x8x8xbf16>, vector<2x8x16xbf16>, vector<2x8x16xf32> -> vector<2x8x16xf32>
    "tpu.trace_stop"() : () -> ()
    %46 = vector.extract_strided_slice %45 {offsets = [0, 0, 0], sizes = [1, 8, 16], strides = [1, 1, 1]} : vector<2x8x16xf32> to vector<1x8x16xf32>
    %47 = vector.extract_strided_slice %45 {offsets = [1, 0, 0], sizes = [1, 8, 16], strides = [1, 1, 1]} : vector<2x8x16xf32> to vector<1x8x16xf32>
    %48 = tpu.concatenate %46, %47 in 2 : vector<1x8x16xf32>, vector<1x8x16xf32> -> vector<1x8x32xf32>
    %49 = vector.shape_cast %48 : vector<1x8x32xf32> to vector<8x32xf32>
    %50 = arith.truncf %49 : vector<8x32xf32> to vector<8x32xbf16>
    %c0_20 = arith.constant 0 : index
    %c0_21 = arith.constant 0 : index
    %c0_22 = arith.constant 0 : index
    %51 = vector.load %arg7[%c0_20, %c0_21, %c0_22] : memref<1x32x32xbf16, #tpu.memory_space<vmem>>, vector<1x32x32xbf16>
    %52 = vector.shape_cast %51 : vector<1x32x32xbf16> to vector<32x32xbf16>
    %cst_23 = arith.constant dense<0.000000e+00> : vector<8x32xf32>
    %53 = tpu.matmul %50, %52, %cst_23 {dimension_numbers = #tpu.dot_dimension_numbers<[1], [0], [0], [1], [0, 0, 1, 1], [], []>} : vector<8x32xbf16>, vector<32x32xbf16>, vector<8x32xf32> -> vector<8x32xf32>
    %c0_24 = arith.constant 0 : index
    %c0_25 = arith.constant 0 : index
    %c0_26 = arith.constant 0 : index
    %54 = vector.load %arg8[%c0_24, %c0_25, %c0_26] : memref<1x1x32xf32, #tpu.memory_space<vmem>>, vector<1x1x32xf32>
    %55 = vector.shape_cast %54 : vector<1x1x32xf32> to vector<1x32xf32>
    %56 = vector.broadcast %55 : vector<1x32xf32> to vector<8x32xf32>
    %57 = arith.addf %53, %56 : vector<8x32xf32>
    %58 = vector.shape_cast %57 : vector<8x32xf32> to vector<1x8x32xf32>
    %59 = arith.addf %58, %3 : vector<1x8x32xf32>
    %c0_27 = arith.constant 0 : index
    %c0_28 = arith.constant 0 : index
    %c0_29 = arith.constant 0 : index
    %60 = vector.load %arg9[%c0_27, %c0_28, %c0_29] : memref<1x1x32xf32, #tpu.memory_space<vmem>>, vector<1x1x32xf32>
    %61 = vector.shape_cast %60 : vector<1x1x32xf32> to vector<1x32xf32>
    %c0_30 = arith.constant 0 : index
    %c0_31 = arith.constant 0 : index
    %c0_32 = arith.constant 0 : index
    %62 = vector.load %arg10[%c0_30, %c0_31, %c0_32] : memref<1x1x32xf32, #tpu.memory_space<vmem>>, vector<1x1x32xf32>
    %63 = vector.shape_cast %62 : vector<1x1x32xf32> to vector<1x32xf32>
    %cst_33 = arith.constant dense<0.000000e+00> : vector<1x8xf32>
    %64 = vector.multi_reduction <add>, %59, %cst_33 [2] : vector<1x8x32xf32> to vector<1x8xf32>
    %65 = vector.shape_cast %64 : vector<1x8xf32> to vector<1x8x1xf32>
    %cst_34 = arith.constant 3.200000e+01 : f32
    %66 = vector.broadcast %cst_34 : f32 to vector<1x8x1xf32>
    %67 = arith.divf %65, %66 : vector<1x8x1xf32>
    %68 = vector.broadcast %67 : vector<1x8x1xf32> to vector<1x8x32xf32>
    %69 = arith.subf %59, %68 : vector<1x8x32xf32>
    %70 = arith.mulf %69, %69 : vector<1x8x32xf32>
    %cst_35 = arith.constant dense<0.000000e+00> : vector<1x8xf32>
    %71 = vector.multi_reduction <add>, %70, %cst_35 [2] : vector<1x8x32xf32> to vector<1x8xf32>
    %72 = vector.shape_cast %71 : vector<1x8xf32> to vector<1x8x1xf32>
    %cst_36 = arith.constant 3.200000e+01 : f32
    %73 = vector.broadcast %cst_36 : f32 to vector<1x8x1xf32>
    %74 = arith.divf %72, %73 : vector<1x8x1xf32>
    %75 = vector.broadcast %67 : vector<1x8x1xf32> to vector<1x8x32xf32>
    %76 = arith.subf %59, %75 : vector<1x8x32xf32>
    %cst_37 = arith.constant 9.99999974E-6 : f32
    %77 = vector.broadcast %cst_37 : f32 to vector<1x8x1xf32>
    %78 = arith.addf %74, %77 : vector<1x8x1xf32>
    %79 = math.rsqrt %78 : vector<1x8x1xf32>
    %80 = vector.broadcast %79 : vector<1x8x1xf32> to vector<1x8x32xf32>
    %81 = arith.mulf %76, %80 : vector<1x8x32xf32>
    %82 = vector.shape_cast %61 : vector<1x32xf32> to vector<1x1x32xf32>
    %83 = vector.broadcast %82 : vector<1x1x32xf32> to vector<1x8x32xf32>
    %84 = arith.mulf %81, %83 : vector<1x8x32xf32>
    %85 = vector.shape_cast %63 : vector<1x32xf32> to vector<1x1x32xf32>
    %86 = vector.broadcast %85 : vector<1x1x32xf32> to vector<1x8x32xf32>
    %87 = arith.addf %84, %86 : vector<1x8x32xf32>
    %88 = vector.broadcast %7 : vector<1x8x1xf32> to vector<1x8x32xf32>
    %89 = arith.mulf %87, %88 : vector<1x8x32xf32>
    %90 = arith.truncf %89 : vector<1x8x32xf32> to vector<1x8x32xbf16>
    %c0_38 = arith.constant 0 : index
    %c4 = arith.constant 4 : index
    %c0_39 = arith.constant 0 : index
    %91 = vector.load %arg18[%c0_38, %c4, %c0_39] : memref<1x16x32xbf16, #tpu.memory_space<vmem>>, vector<1x8x32xbf16>
    tpu.vector_store %arg18[%c0_38, %c4, %c0_39], %90 {strides = array<i32>} : memref<1x16x32xbf16, #tpu.memory_space<vmem>>, vector<1x8x32xbf16>,
    %c0_40 = arith.constant 0 : index
    %c0_41 = arith.constant 0 : index
    %c0_42 = arith.constant 0 : index
    %92 = vector.load %arg18[%c0_40, %c0_41, %c0_42] : memref<1x16x32xbf16, #tpu.memory_space<vmem>>, vector<1x16x32xbf16>
    %cst_43 = arith.constant 0.000000e+00 : f32
    %93 = vector.broadcast %cst_43 : f32 to vector<8x64xf32>
    %94 = vector.extract_strided_slice %92 {offsets = [0, 0, 0], sizes = [1, 8, 32], strides = [1, 1, 1]} : vector<1x16x32xbf16> to vector<1x8x32xbf16>
    %95 = vector.shape_cast %94 : vector<1x8x32xbf16> to vector<8x32xbf16>
    %c0_44 = arith.constant 0 : index
    %c0_45 = arith.constant 0 : index
    %c0_46 = arith.constant 0 : index
    %c0_47 = arith.constant 0 : index
    %96 = vector.load %arg11[%c0_44, %c0_45, %c0_46, %c0_47] : memref<1x9x32x64xbf16, #tpu.memory_space<vmem>>, vector<1x1x32x64xbf16>
    %97 = vector.shape_cast %96 : vector<1x1x32x64xbf16> to vector<32x64xbf16>
    %cst_48 = arith.constant dense<0.000000e+00> : vector<8x64xf32>
    %98 = tpu.matmul %95, %97, %cst_48 {dimension_numbers = #tpu.dot_dimension_numbers<[1], [0], [0], [1], [0, 0, 1, 1], [], []>} : vector<8x32xbf16>, vector<32x64xbf16>, vector<8x64xf32> -> vector<8x64xf32>
    %99 = arith.addf %93, %98 : vector<8x64xf32>
    %100 = vector.extract_strided_slice %92 {offsets = [0, 1, 0], sizes = [1, 8, 32], strides = [1, 1, 1]} : vector<1x16x32xbf16> to vector<1x8x32xbf16>
    %101 = vector.shape_cast %100 : vector<1x8x32xbf16> to vector<8x32xbf16>
    %c0_49 = arith.constant 0 : index
    %c1 = arith.constant 1 : index
    %c0_50 = arith.constant 0 : index
    %c0_51 = arith.constant 0 : index
    %102 = vector.load %arg11[%c0_49, %c1, %c0_50, %c0_51] : memref<1x9x32x64xbf16, #tpu.memory_space<vmem>>, vector<1x1x32x64xbf16>
    %103 = vector.shape_cast %102 : vector<1x1x32x64xbf16> to vector<32x64xbf16>
    %cst_52 = arith.constant dense<0.000000e+00> : vector<8x64xf32>
    %104 = tpu.matmul %101, %103, %cst_52 {dimension_numbers = #tpu.dot_dimension_numbers<[1], [0], [0], [1], [0, 0, 1, 1], [], []>} : vector<8x32xbf16>, vector<32x64xbf16>, vector<8x64xf32> -> vector<8x64xf32>
    %105 = arith.addf %99, %104 : vector<8x64xf32>
    %106 = vector.extract_strided_slice %92 {offsets = [0, 2, 0], sizes = [1, 8, 32], strides = [1, 1, 1]} : vector<1x16x32xbf16> to vector<1x8x32xbf16>
    %107 = vector.shape_cast %106 : vector<1x8x32xbf16> to vector<8x32xbf16>
    %c0_53 = arith.constant 0 : index
    %c2 = arith.constant 2 : index
    %c0_54 = arith.constant 0 : index
    %c0_55 = arith.constant 0 : index
    %108 = vector.load %arg11[%c0_53, %c2, %c0_54, %c0_55] : memref<1x9x32x64xbf16, #tpu.memory_space<vmem>>, vector<1x1x32x64xbf16>
    %109 = vector.shape_cast %108 : vector<1x1x32x64xbf16> to vector<32x64xbf16>
    %cst_56 = arith.constant dense<0.000000e+00> : vector<8x64xf32>
    %110 = tpu.matmul %107, %109, %cst_56 {dimension_numbers = #tpu.dot_dimension_numbers<[1], [0], [0], [1], [0, 0, 1, 1], [], []>} : vector<8x32xbf16>, vector<32x64xbf16>, vector<8x64xf32> -> vector<8x64xf32>
    %111 = arith.addf %105, %110 : vector<8x64xf32>
    %112 = vector.extract_strided_slice %92 {offsets = [0, 3, 0], sizes = [1, 8, 32], strides = [1, 1, 1]} : vector<1x16x32xbf16> to vector<1x8x32xbf16>
    %113 = vector.shape_cast %112 : vector<1x8x32xbf16> to vector<8x32xbf16>
    %c0_57 = arith.constant 0 : index
    %c3 = arith.constant 3 : index
    %c0_58 = arith.constant 0 : index
    %c0_59 = arith.constant 0 : index
    %114 = vector.load %arg11[%c0_57, %c3, %c0_58, %c0_59] : memref<1x9x32x64xbf16, #tpu.memory_space<vmem>>, vector<1x1x32x64xbf16>
    %115 = vector.shape_cast %114 : vector<1x1x32x64xbf16> to vector<32x64xbf16>
    %cst_60 = arith.constant dense<0.000000e+00> : vector<8x64xf32>
    %116 = tpu.matmul %113, %115, %cst_60 {dimension_numbers = #tpu.dot_dimension_numbers<[1], [0], [0], [1], [0, 0, 1, 1], [], []>} : vector<8x32xbf16>, vector<32x64xbf16>, vector<8x64xf32> -> vector<8x64xf32>
    %117 = arith.addf %111, %116 : vector<8x64xf32>
    %118 = vector.extract_strided_slice %92 {offsets = [0, 4, 0], sizes = [1, 8, 32], strides = [1, 1, 1]} : vector<1x16x32xbf16> to vector<1x8x32xbf16>
    %119 = vector.shape_cast %118 : vector<1x8x32xbf16> to vector<8x32xbf16>
    %c0_61 = arith.constant 0 : index
    %c4_62 = arith.constant 4 : index
    %c0_63 = arith.constant 0 : index
    %c0_64 = arith.constant 0 : index
    %120 = vector.load %arg11[%c0_61, %c4_62, %c0_63, %c0_64] : memref<1x9x32x64xbf16, #tpu.memory_space<vmem>>, vector<1x1x32x64xbf16>
    %121 = vector.shape_cast %120 : vector<1x1x32x64xbf16> to vector<32x64xbf16>
    %cst_65 = arith.constant dense<0.000000e+00> : vector<8x64xf32>
    %122 = tpu.matmul %119, %121, %cst_65 {dimension_numbers = #tpu.dot_dimension_numbers<[1], [0], [0], [1], [0, 0, 1, 1], [], []>} : vector<8x32xbf16>, vector<32x64xbf16>, vector<8x64xf32> -> vector<8x64xf32>
    %123 = arith.addf %117, %122 : vector<8x64xf32>
    %124 = vector.extract_strided_slice %92 {offsets = [0, 5, 0], sizes = [1, 8, 32], strides = [1, 1, 1]} : vector<1x16x32xbf16> to vector<1x8x32xbf16>
    %125 = vector.shape_cast %124 : vector<1x8x32xbf16> to vector<8x32xbf16>
    %c0_66 = arith.constant 0 : index
    %c5 = arith.constant 5 : index
    %c0_67 = arith.constant 0 : index
    %c0_68 = arith.constant 0 : index
    %126 = vector.load %arg11[%c0_66, %c5, %c0_67, %c0_68] : memref<1x9x32x64xbf16, #tpu.memory_space<vmem>>, vector<1x1x32x64xbf16>
    %127 = vector.shape_cast %126 : vector<1x1x32x64xbf16> to vector<32x64xbf16>
    %cst_69 = arith.constant dense<0.000000e+00> : vector<8x64xf32>
    %128 = tpu.matmul %125, %127, %cst_69 {dimension_numbers = #tpu.dot_dimension_numbers<[1], [0], [0], [1], [0, 0, 1, 1], [], []>} : vector<8x32xbf16>, vector<32x64xbf16>, vector<8x64xf32> -> vector<8x64xf32>
    %129 = arith.addf %123, %128 : vector<8x64xf32>
    %130 = vector.extract_strided_slice %92 {offsets = [0, 6, 0], sizes = [1, 8, 32], strides = [1, 1, 1]} : vector<1x16x32xbf16> to vector<1x8x32xbf16>
    %131 = vector.shape_cast %130 : vector<1x8x32xbf16> to vector<8x32xbf16>
    %c0_70 = arith.constant 0 : index
    %c6 = arith.constant 6 : index
    %c0_71 = arith.constant 0 : index
    %c0_72 = arith.constant 0 : index
    %132 = vector.load %arg11[%c0_70, %c6, %c0_71, %c0_72] : memref<1x9x32x64xbf16, #tpu.memory_space<vmem>>, vector<1x1x32x64xbf16>
    %133 = vector.shape_cast %132 : vector<1x1x32x64xbf16> to vector<32x64xbf16>
    %cst_73 = arith.constant dense<0.000000e+00> : vector<8x64xf32>
    %134 = tpu.matmul %131, %133, %cst_73 {dimension_numbers = #tpu.dot_dimension_numbers<[1], [0], [0], [1], [0, 0, 1, 1], [], []>} : vector<8x32xbf16>, vector<32x64xbf16>, vector<8x64xf32> -> vector<8x64xf32>
    %135 = arith.addf %129, %134 : vector<8x64xf32>
    %136 = vector.extract_strided_slice %92 {offsets = [0, 7, 0], sizes = [1, 8, 32], strides = [1, 1, 1]} : vector<1x16x32xbf16> to vector<1x8x32xbf16>
    %137 = vector.shape_cast %136 : vector<1x8x32xbf16> to vector<8x32xbf16>
    %c0_74 = arith.constant 0 : index
    %c7 = arith.constant 7 : index
    %c0_75 = arith.constant 0 : index
    %c0_76 = arith.constant 0 : index
    %138 = vector.load %arg11[%c0_74, %c7, %c0_75, %c0_76] : memref<1x9x32x64xbf16, #tpu.memory_space<vmem>>, vector<1x1x32x64xbf16>
    %139 = vector.shape_cast %138 : vector<1x1x32x64xbf16> to vector<32x64xbf16>
    %cst_77 = arith.constant dense<0.000000e+00> : vector<8x64xf32>
    %140 = tpu.matmul %137, %139, %cst_77 {dimension_numbers = #tpu.dot_dimension_numbers<[1], [0], [0], [1], [0, 0, 1, 1], [], []>} : vector<8x32xbf16>, vector<32x64xbf16>, vector<8x64xf32> -> vector<8x64xf32>
    %141 = arith.addf %135, %140 : vector<8x64xf32>
    %142 = vector.extract_strided_slice %92 {offsets = [0, 8, 0], sizes = [1, 8, 32], strides = [1, 1, 1]} : vector<1x16x32xbf16> to vector<1x8x32xbf16>
    %143 = vector.shape_cast %142 : vector<1x8x32xbf16> to vector<8x32xbf16>
    %c0_78 = arith.constant 0 : index
    %c8 = arith.constant 8 : index
    %c0_79 = arith.constant 0 : index
    %c0_80 = arith.constant 0 : index
    %144 = vector.load %arg11[%c0_78, %c8, %c0_79, %c0_80] : memref<1x9x32x64xbf16, #tpu.memory_space<vmem>>, vector<1x1x32x64xbf16>
    %145 = vector.shape_cast %144 : vector<1x1x32x64xbf16> to vector<32x64xbf16>
    %cst_81 = arith.constant dense<0.000000e+00> : vector<8x64xf32>
    %146 = tpu.matmul %143, %145, %cst_81 {dimension_numbers = #tpu.dot_dimension_numbers<[1], [0], [0], [1], [0, 0, 1, 1], [], []>} : vector<8x32xbf16>, vector<32x64xbf16>, vector<8x64xf32> -> vector<8x64xf32>
    %147 = arith.addf %141, %146 : vector<8x64xf32>
    %c0_82 = arith.constant 0 : index
    %c0_83 = arith.constant 0 : index
    %c0_84 = arith.constant 0 : index
    %148 = vector.load %arg12[%c0_82, %c0_83, %c0_84] : memref<1x1x64xf32, #tpu.memory_space<vmem>>, vector<1x1x64xf32>
    %149 = vector.shape_cast %148 : vector<1x1x64xf32> to vector<1x64xf32>
    %150 = vector.broadcast %149 : vector<1x64xf32> to vector<8x64xf32>
    %151 = arith.addf %147, %150 : vector<8x64xf32>
    %cst_85 = arith.constant 0.000000e+00 : f32
    %152 = vector.broadcast %cst_85 : f32 to vector<8x64xf32>
    %153 = arith.maximumf %151, %152 : vector<8x64xf32>
    %154 = arith.truncf %153 : vector<8x64xf32> to vector<8x64xbf16>
    %c0_86 = arith.constant 0 : index
    %c0_87 = arith.constant 0 : index
    %c0_88 = arith.constant 0 : index
    %155 = vector.load %arg13[%c0_86, %c0_87, %c0_88] : memref<1x64x32xbf16, #tpu.memory_space<vmem>>, vector<1x64x32xbf16>
    %156 = vector.shape_cast %155 : vector<1x64x32xbf16> to vector<64x32xbf16>
    %cst_89 = arith.constant dense<0.000000e+00> : vector<8x32xf32>
    %157 = tpu.matmul %154, %156, %cst_89 {dimension_numbers = #tpu.dot_dimension_numbers<[1], [0], [0], [1], [0, 0, 1, 1], [], []>} : vector<8x64xbf16>, vector<64x32xbf16>, vector<8x32xf32> -> vector<8x32xf32>
    %c0_90 = arith.constant 0 : index
    %c0_91 = arith.constant 0 : index
    %c0_92 = arith.constant 0 : index
    %158 = vector.load %arg14[%c0_90, %c0_91, %c0_92] : memref<1x1x32xf32, #tpu.memory_space<vmem>>, vector<1x1x32xf32>
    %159 = vector.shape_cast %158 : vector<1x1x32xf32> to vector<1x32xf32>
    %160 = vector.broadcast %159 : vector<1x32xf32> to vector<8x32xf32>
    %161 = arith.addf %157, %160 : vector<8x32xf32>
    %162 = vector.shape_cast %161 : vector<8x32xf32> to vector<1x8x32xf32>
    %163 = arith.addf %162, %89 : vector<1x8x32xf32>
    %c0_93 = arith.constant 0 : index
    %c0_94 = arith.constant 0 : index
    %c0_95 = arith.constant 0 : index
    %164 = vector.load %arg15[%c0_93, %c0_94, %c0_95] : memref<1x1x32xf32, #tpu.memory_space<vmem>>, vector<1x1x32xf32>
    %165 = vector.shape_cast %164 : vector<1x1x32xf32> to vector<1x32xf32>
    %c0_96 = arith.constant 0 : index
    %c0_97 = arith.constant 0 : index
    %c0_98 = arith.constant 0 : index
    %166 = vector.load %arg16[%c0_96, %c0_97, %c0_98] : memref<1x1x32xf32, #tpu.memory_space<vmem>>, vector<1x1x32xf32>
    %167 = vector.shape_cast %166 : vector<1x1x32xf32> to vector<1x32xf32>
    %cst_99 = arith.constant dense<0.000000e+00> : vector<1x8xf32>
    %168 = vector.multi_reduction <add>, %163, %cst_99 [2] : vector<1x8x32xf32> to vector<1x8xf32>
    %169 = vector.shape_cast %168 : vector<1x8xf32> to vector<1x8x1xf32>
    %cst_100 = arith.constant 3.200000e+01 : f32
    %170 = vector.broadcast %cst_100 : f32 to vector<1x8x1xf32>
    %171 = arith.divf %169, %170 : vector<1x8x1xf32>
    %172 = vector.broadcast %171 : vector<1x8x1xf32> to vector<1x8x32xf32>
    %173 = arith.subf %163, %172 : vector<1x8x32xf32>
    %174 = arith.mulf %173, %173 : vector<1x8x32xf32>
    %cst_101 = arith.constant dense<0.000000e+00> : vector<1x8xf32>
    %175 = vector.multi_reduction <add>, %174, %cst_101 [2] : vector<1x8x32xf32> to vector<1x8xf32>
    %176 = vector.shape_cast %175 : vector<1x8xf32> to vector<1x8x1xf32>
    %cst_102 = arith.constant 3.200000e+01 : f32
    %177 = vector.broadcast %cst_102 : f32 to vector<1x8x1xf32>
    %178 = arith.divf %176, %177 : vector<1x8x1xf32>
    %179 = vector.broadcast %171 : vector<1x8x1xf32> to vector<1x8x32xf32>
    %180 = arith.subf %163, %179 : vector<1x8x32xf32>
    %cst_103 = arith.constant 9.99999974E-6 : f32
    %181 = vector.broadcast %cst_103 : f32 to vector<1x8x1xf32>
    %182 = arith.addf %178, %181 : vector<1x8x1xf32>
    %183 = math.rsqrt %182 : vector<1x8x1xf32>
    %184 = vector.broadcast %183 : vector<1x8x1xf32> to vector<1x8x32xf32>
    %185 = arith.mulf %180, %184 : vector<1x8x32xf32>
    %186 = vector.shape_cast %165 : vector<1x32xf32> to vector<1x1x32xf32>
    %187 = vector.broadcast %186 : vector<1x1x32xf32> to vector<1x8x32xf32>
    %188 = arith.mulf %185, %187 : vector<1x8x32xf32>
    %189 = vector.shape_cast %167 : vector<1x32xf32> to vector<1x1x32xf32>
    %190 = vector.broadcast %189 : vector<1x1x32xf32> to vector<1x8x32xf32>
    %191 = arith.addf %188, %190 : vector<1x8x32xf32>
    %192 = vector.broadcast %7 : vector<1x8x1xf32> to vector<1x8x32xf32>
    %193 = arith.mulf %191, %192 : vector<1x8x32xf32>
    %c0_104 = arith.constant 0 : index
    %c0_105 = arith.constant 0 : index
    %c0_106 = arith.constant 0 : index
    %194 = vector.load %arg17[%c0_104, %c0_105, %c0_106] : memref<1x8x32xf32, #tpu.memory_space<vmem>>, vector<1x8x32xf32>
    tpu.vector_store %arg17[%c0_104, %c0_105, %c0_106], %193 {strides = array<i32>} : memref<1x8x32xf32, #tpu.memory_space<vmem>>, vector<1x8x32xf32>,
    return
  }
  func.func @transform_0(%arg0: i32, %arg1: i32) -> (i32, i32, i32) {
    %c0_i32 = arith.constant 0 : i32
    %c0_i32_0 = arith.constant 0 : i32
    %c0_i32_1 = arith.constant 0 : i32
    return %arg0, %c0_i32, %c0_i32_0 : i32, i32, i32
  }
  func.func @transform_1(%arg0: i32, %arg1: i32) -> (i32, i32, i32) {
    %c0_i32 = arith.constant 0 : i32
    %c0_i32_0 = arith.constant 0 : i32
    %c0_i32_1 = arith.constant 0 : i32
    return %arg0, %c0_i32, %c0_i32_0 : i32, i32, i32
  }
  func.func @transform_2(%arg0: i32, %arg1: i32) -> (i32, i32, i32) {
    %c0_i32 = arith.constant 0 : i32
    %c0_i32_0 = arith.constant 0 : i32
    %c0_i32_1 = arith.constant 0 : i32
    return %arg0, %c0_i32, %c0_i32_0 : i32, i32, i32
  }
  func.func @transform_3(%arg0: i32, %arg1: i32) -> (i32, i32, i32) {
    %c0_i32 = arith.constant 0 : i32
    %c0_i32_0 = arith.constant 0 : i32
    %c0_i32_1 = arith.constant 0 : i32
    return %arg1, %c0_i32, %c0_i32_0 : i32, i32, i32
  }
  func.func @transform_4(%arg0: i32, %arg1: i32) -> (i32, i32, i32) {
    %c0_i32 = arith.constant 0 : i32
    %c0_i32_0 = arith.constant 0 : i32
    %c0_i32_1 = arith.constant 0 : i32
    return %arg1, %c0_i32, %c0_i32_0 : i32, i32, i32
  }
  func.func @transform_5(%arg0: i32, %arg1: i32) -> (i32, i32, i32) {
    %c0_i32 = arith.constant 0 : i32
    %c0_i32_0 = arith.constant 0 : i32
    %c0_i32_1 = arith.constant 0 : i32
    return %arg1, %c0_i32, %c0_i32_0 : i32, i32, i32
  }
  func.func @transform_6(%arg0: i32, %arg1: i32) -> (i32, i32, i32) {
    %c0_i32 = arith.constant 0 : i32
    %c0_i32_0 = arith.constant 0 : i32
    %c0_i32_1 = arith.constant 0 : i32
    return %arg1, %c0_i32, %c0_i32_0 : i32, i32, i32
  }
  func.func @transform_7(%arg0: i32, %arg1: i32) -> (i32, i32, i32) {
    %c0_i32 = arith.constant 0 : i32
    %c0_i32_0 = arith.constant 0 : i32
    %c0_i32_1 = arith.constant 0 : i32
    return %arg1, %c0_i32, %c0_i32_0 : i32, i32, i32
  }
  func.func @transform_8(%arg0: i32, %arg1: i32) -> (i32, i32, i32) {
    %c0_i32 = arith.constant 0 : i32
    %c0_i32_0 = arith.constant 0 : i32
    %c0_i32_1 = arith.constant 0 : i32
    return %arg1, %c0_i32, %c0_i32_0 : i32, i32, i32
  }
  func.func @transform_9(%arg0: i32, %arg1: i32) -> (i32, i32, i32, i32) {
    %c0_i32 = arith.constant 0 : i32
    %c0_i32_0 = arith.constant 0 : i32
    %c0_i32_1 = arith.constant 0 : i32
    %c0_i32_2 = arith.constant 0 : i32
    return %arg1, %c0_i32, %c0_i32_0, %c0_i32_1 : i32, i32, i32, i32
  }
  func.func @transform_10(%arg0: i32, %arg1: i32) -> (i32, i32, i32) {
    %c0_i32 = arith.constant 0 : i32
    %c0_i32_0 = arith.constant 0 : i32
    %c0_i32_1 = arith.constant 0 : i32
    return %arg1, %c0_i32, %c0_i32_0 : i32, i32, i32
  }
  func.func @transform_11(%arg0: i32, %arg1: i32) -> (i32, i32, i32) {
    %c0_i32 = arith.constant 0 : i32
    %c0_i32_0 = arith.constant 0 : i32
    %c0_i32_1 = arith.constant 0 : i32
    return %arg1, %c0_i32, %c0_i32_0 : i32, i32, i32
  }
  func.func @transform_12(%arg0: i32, %arg1: i32) -> (i32, i32, i32) {
    %c0_i32 = arith.constant 0 : i32
    %c0_i32_0 = arith.constant 0 : i32
    %c0_i32_1 = arith.constant 0 : i32
    return %arg1, %c0_i32, %c0_i32_0 : i32, i32, i32
  }
  func.func @transform_13(%arg0: i32, %arg1: i32) -> (i32, i32, i32) {
    %c0_i32 = arith.constant 0 : i32
    %c0_i32_0 = arith.constant 0 : i32
    %c0_i32_1 = arith.constant 0 : i32
    return %arg1, %c0_i32, %c0_i32_0 : i32, i32, i32
  }
  func.func @transform_14(%arg0: i32, %arg1: i32) -> (i32, i32, i32) {
    %c0_i32 = arith.constant 0 : i32
    %c0_i32_0 = arith.constant 0 : i32
    %c0_i32_1 = arith.constant 0 : i32
    return %arg1, %c0_i32, %c0_i32_0 : i32, i32, i32
  }
  func.func @transform_15(%arg0: i32, %arg1: i32) -> (i32, i32, i32) {
    %c0_i32 = arith.constant 0 : i32
    %c0_i32_0 = arith.constant 0 : i32
    %c0_i32_1 = arith.constant 0 : i32
    return %arg0, %c0_i32, %c0_i32_0 : i32, i32, i32
  }
}

</mosaic_0001>

<llo_original>
// kernel: tpu_custom_call.1
$region0: #{tpu_custom_call.1}
  #allocation0 [shape = 'u32[]', space=smem, size = 0x4, offset = 0x4, fixed_abs, tag = 'smem constant byte address 0x4 - core index']
  #allocation1 [shape = 'u32[144,128]{1,0:T(1,128)}', space=vmem, size = 0x12000, scoped, tag = 'internal scratch']
  #allocation2 [shape = 'bf16[1,16,32]{2,1,0:T(8,128)(2,1)}', space=vmem, size = 0x1000, scoped, tag = 'scratch operand']
  %s0 = inlined_call_operand.vmem [shape: f32[2,8,32], index: 0, kind: input, shape index: {}]
  %s1 = inlined_call_operand.vmem [shape: f32[2,1,8], index: 1, kind: input, shape index: {}]
  %s2 = inlined_call_operand.vmem [shape: f32[2,8,1], index: 2, kind: input, shape index: {}]
  %s3 = inlined_call_operand.vmem [shape: bf16[2,32,96], index: 3, kind: input, shape index: {}]
  %s4 = inlined_call_operand.vmem [shape: f32[2,1,96], index: 4, kind: input, shape index: {}]
  %s5 = inlined_call_operand.vmem [shape: bf16[2,32,32], index: 5, kind: input, shape index: {}]
  %s6 = inlined_call_operand.vmem [shape: f32[2,1,32], index: 6, kind: input, shape index: {}]
  %s7 = inlined_call_operand.vmem [shape: f32[2,1,32], index: 7, kind: input, shape index: {}]
  %s8 = inlined_call_operand.vmem [shape: f32[2,1,32], index: 8, kind: input, shape index: {}]
  %s9 = inlined_call_operand.hbm [shape: bf16[2,9,32,64], index: 9, kind: input, shape index: {}]
  %s10 = inlined_call_operand.vmem [shape: f32[2,1,64], index: 10, kind: input, shape index: {}]
  %s11 = inlined_call_operand.vmem [shape: bf16[2,64,32], index: 11, kind: input, shape index: {}]
  %s12 = inlined_call_operand.vmem [shape: f32[2,1,32], index: 12, kind: input, shape index: {}]
  %s13 = inlined_call_operand.vmem [shape: f32[2,1,32], index: 13, kind: input, shape index: {}]
  %s14 = inlined_call_operand.vmem [shape: f32[2,1,32], index: 14, kind: input, shape index: {}]
  %s15 = inlined_call_operand.hbm [shape: f32[2,8,32], index: 15, kind: output, shape index: {}]
  %s16 = sld [smem:[#allocation0]]
  $region101: #{tpu_custom_call.1} parent=0
    _
  %s18 = ssub.s32 1, %s16
  %s19 = scalar_select 0, %s18, %s16
  $region1: #{tpu_custom_call.1} parent=0
    #allocation3 [shape = 'u8[147456]{0}', space=vmem, size = 0x24000, scoped, tag = 'input window, operand 9']
    #allocation4 [shape = 's32[2]{0}', space=sflag, size = 0x8, scoped, tag = 'scoped memory for tpu_custom_call.1']
    #allocation5 [shape = 's32[2]{0}', space=sflag, size = 0x8, scoped, tag = 'scoped memory for tpu_custom_call.1']
    #allocation6 [shape = 'u8[8192]{0}', space=vmem, size = 0x2000, scoped, tag = 'output window, operand 0']
    %20 = vsyncpa [#allocation4], 0
    %s21 = scalar_lea.sflag [#allocation4], 1
    %22 = vsyncpa %s21, 0
    %23 = vsyncpa [#allocation5], 0
    %s24 = scalar_lea.sflag [#allocation5], 1
    %25 = vsyncpa %s24, 0
    loop: start=0, step=1, limit=6
    $region2: #{tpu_custom_call.1} parent=1 // loop_pre_header
      _
    $region3: #{tpu_custom_call.1} parent=1 // loop_header
      %s27 = sphi 0, %s31
      %p28 = scmp.ge.s32.totalorder %s27, 6
      %s34 = sphi 0, %s46
      %s35 = sphi 0, %s42
      %s36 = sphi 0, %s34
      %s37 = sphi 0, %s35
      %s38 = sphi 0, %s36
      %s39 = sphi 0, %s37
      %s49 = sphi 0, %s51
      %s52 = sphi 0, %s49
      %s53 = sphi 0, %s52
      %s69 = sphi 0, %s53
      %s75 = sphi 0, %s77
      %s78 = sphi 0, %s75
      %s79 = sphi 0, %s78
      %s95 = sphi 0, %s79
      %s101 = sphi 0, %s103
      %s104 = sphi 0, %s101
      %s105 = sphi 0, %s104
      %s121 = sphi 0, %s105
      %s127 = sphi 0, %s129
      %s130 = sphi 0, %s127
      %s131 = sphi 0, %s130
      %s147 = sphi 0, %s131
      %s153 = sphi 0, %s155
      %s156 = sphi 0, %s153
      %s157 = sphi 0, %s156
      %s173 = sphi 0, %s157
      %s179 = sphi 0, %s181
      %s182 = sphi 0, %s179
      %s183 = sphi 0, %s182
      %s199 = sphi 0, %s183
      %s205 = sphi 0, %s207
      %s208 = sphi 0, %s205
      %s209 = sphi 0, %s208
      %s225 = sphi 0, %s209
      %s231 = sphi 0, %s233
      %s234 = sphi 0, %s231
      %s235 = sphi 0, %s234
      %s251 = sphi 0, %s235
      %s257 = sphi 0, %s259
      %s260 = sphi 0, %s257
      %s261 = sphi 0, %s260
      %s277 = sphi 0, %s261
      %s283 = sphi 0, %s285
      %s286 = sphi 0, %s283
      %s287 = sphi 0, %s286
      %s303 = sphi 0, %s287
      %s309 = sphi 0, %s311
      %s312 = sphi 0, %s309
      %s313 = sphi 0, %s312
      %s329 = sphi 0, %s313
      %s335 = sphi 0, %s337
      %s338 = sphi 0, %s335
      %s339 = sphi 0, %s338
      %s355 = sphi 0, %s339
      %s361 = sphi 0, %s363
      %s364 = sphi 0, %s361
      %s365 = sphi 0, %s364
      %s381 = sphi 0, %s365
      %s387 = sphi 0, %s389
      %s390 = sphi 0, %s387
      %s391 = sphi 0, %s390
      %s407 = sphi 0, %s391
      %s413 = sphi 0, %s415
      %s416 = sphi 0, %s413
      %s417 = sphi 0, %s416
      %s433 = sphi 0, %s417
      %s439 = sphi 0, %s441
      %s442 = sphi 0, %s439
      %s443 = sphi 0, %s442
      %s459 = sphi 0, %s443
    $region4: #{tpu_custom_call.1} parent=1 // loop_header_branch
      %30 = sbr.rel (%p28) target = $region8
    $region5: #{tpu_custom_call.1} parent=1 // loop_body
      %s32 = ssub.s32 %s27, 1
      %s33 = ssub.s32 %s27, 2
      %s40 = sadd.s32 1, %s35
      %p41 = scmp.ge.s32.totalorder %s40, 2
      %s42 = scalar_select %p41, 0, %s40
      %s43 = sadd.s32 1, %s34
      %s44 = scalar_select %p41, %s43, %s34
      %p45 = scmp.ge.s32.totalorder %s44, 2
      %s46 = scalar_select %p45, 0, %s44
      %s47 = ssub.s32 %s34, %s46
      %p48 = scmp.eq.s32.totalorder %s47, 0
      %s50 = sadd.s32 %s49, 1
      %s51 = scalar_select %p48, %s49, %s50
      %p54 = pneg %p48
      %p55 = scmp.eq.s32.totalorder %s27, 3
      %p56 = por %p54, %p55
      %p57 = scmp.ne.s32.totalorder %s49, %s52
      %p58 = scmp.eq.s32.totalorder %s27, 0
      %p59 = por %p57, %p58
      %p60 = scmp.ne.s32.totalorder %s49, %s52
      %p61 = scmp.eq.s32.totalorder %s32, 3
      %p62 = por %p60, %p61
      %p63 = scmp.ne.s32.totalorder %s52, %s53
      %p64 = scmp.eq.s32.totalorder %s32, 0
      %p65 = por %p63, %p64
      %p66 = scmp.ne.s32.totalorder %s52, %s53
      %p67 = scmp.eq.s32.totalorder %s33, 3
      %p68 = por %p66, %p67
      %p70 = scmp.ne.s32.totalorder %s53, %s69
      %p71 = scmp.eq.s32.totalorder %s33, 0
      %p72 = por %p70, %p71
      %s73 = ssub.s32 %s34, %s46
      %p74 = scmp.eq.s32.totalorder %s73, 0
      %s76 = sadd.s32 %s75, 1
      %s77 = scalar_select %p74, %s75, %s76
      %p80 = pneg %p74
      %p81 = scmp.eq.s32.totalorder %s27, 3
      %p82 = por %p80, %p81
      %p83 = scmp.ne.s32.totalorder %s75, %s78
      %p84 = scmp.eq.s32.totalorder %s27, 0
      %p85 = por %p83, %p84
      %p86 = scmp.ne.s32.totalorder %s75, %s78
      %p87 = scmp.eq.s32.totalorder %s32, 3
      %p88 = por %p86, %p87
      %p89 = scmp.ne.s32.totalorder %s78, %s79
      %p90 = scmp.eq.s32.totalorder %s32, 0
      %p91 = por %p89, %p90
      %p92 = scmp.ne.s32.totalorder %s78, %s79
      %p93 = scmp.eq.s32.totalorder %s33, 3
      %p94 = por %p92, %p93
      %p96 = scmp.ne.s32.totalorder %s79, %s95
      %p97 = scmp.eq.s32.totalorder %s33, 0
      %p98 = por %p96, %p97
      %s99 = ssub.s32 %s34, %s46
      %p100 = scmp.eq.s32.totalorder %s99, 0
      %s102 = sadd.s32 %s101, 1
      %s103 = scalar_select %p100, %s101, %s102
      %p106 = pneg %p100
      %p107 = scmp.eq.s32.totalorder %s27, 3
      %p108 = por %p106, %p107
      %p109 = scmp.ne.s32.totalorder %s101, %s104
      %p110 = scmp.eq.s32.totalorder %s27, 0
      %p111 = por %p109, %p110
      %p112 = scmp.ne.s32.totalorder %s101, %s104
      %p113 = scmp.eq.s32.totalorder %s32, 3
      %p114 = por %p112, %p113
      %p115 = scmp.ne.s32.totalorder %s104, %s105
      %p116 = scmp.eq.s32.totalorder %s32, 0
      %p117 = por %p115, %p116
      %p118 = scmp.ne.s32.totalorder %s104, %s105
      %p119 = scmp.eq.s32.totalorder %s33, 3
      %p120 = por %p118, %p119
      %p122 = scmp.ne.s32.totalorder %s105, %s121
      %p123 = scmp.eq.s32.totalorder %s33, 0
      %p124 = por %p122, %p123
      %s125 = ssub.s32 %s35, %s42
      %p126 = scmp.eq.s32.totalorder %s125, 0
      %s128 = sadd.s32 %s127, 1
      %s129 = scalar_select %p126, %s127, %s128
      %p132 = pneg %p126
      %p133 = scmp.eq.s32.totalorder %s27, 3
      %p134 = por %p132, %p133
      %p135 = scmp.ne.s32.totalorder %s127, %s130
      %p136 = scmp.eq.s32.totalorder %s27, 0
      %p137 = por %p135, %p136
      %p138 = scmp.ne.s32.totalorder %s127, %s130
      %p139 = scmp.eq.s32.totalorder %s32, 3
      %p140 = por %p138, %p139
      %p141 = scmp.ne.s32.totalorder %s130, %s131
      %p142 = scmp.eq.s32.totalorder %s32, 0
      %p143 = por %p141, %p142
      %p144 = scmp.ne.s32.totalorder %s130, %s131
      %p145 = scmp.eq.s32.totalorder %s33, 3
      %p146 = por %p144, %p145
      %p148 = scmp.ne.s32.totalorder %s131, %s147
      %p149 = scmp.eq.s32.totalorder %s33, 0
      %p150 = por %p148, %p149
      %s151 = ssub.s32 %s35, %s42
      %p152 = scmp.eq.s32.totalorder %s151, 0
      %s154 = sadd.s32 %s153, 1
      %s155 = scalar_select %p152, %s153, %s154
      %p158 = pneg %p152
      %p159 = scmp.eq.s32.totalorder %s27, 3
      %p160 = por %p158, %p159
      %p161 = scmp.ne.s32.totalorder %s153, %s156
      %p162 = scmp.eq.s32.totalorder %s27, 0
      %p163 = por %p161, %p162
      %p164 = scmp.ne.s32.totalorder %s153, %s156
      %p165 = scmp.eq.s32.totalorder %s32, 3
      %p166 = por %p164, %p165
      %p167 = scmp.ne.s32.totalorder %s156, %s157
      %p168 = scmp.eq.s32.totalorder %s32, 0
      %p169 = por %p167, %p168
      %p170 = scmp.ne.s32.totalorder %s156, %s157
      %p171 = scmp.eq.s32.totalorder %s33, 3
      %p172 = por %p170, %p171
      %p174 = scmp.ne.s32.totalorder %s157, %s173
      %p175 = scmp.eq.s32.totalorder %s33, 0
      %p176 = por %p174, %p175
      %s177 = ssub.s32 %s35, %s42
      %p178 = scmp.eq.s32.totalorder %s177, 0
      %s180 = sadd.s32 %s179, 1
      %s181 = scalar_select %p178, %s179, %s180
      %p184 = pneg %p178
      %p185 = scmp.eq.s32.totalorder %s27, 3
      %p186 = por %p184, %p185
      %p187 = scmp.ne.s32.totalorder %s179, %s182
      %p188 = scmp.eq.s32.totalorder %s27, 0
      %p189 = por %p187, %p188
      %p190 = scmp.ne.s32.totalorder %s179, %s182
      %p191 = scmp.eq.s32.totalorder %s32, 3
      %p192 = por %p190, %p191
      %p193 = scmp.ne.s32.totalorder %s182, %s183
      %p194 = scmp.eq.s32.totalorder %s32, 0
      %p195 = por %p193, %p194
      %p196 = scmp.ne.s32.totalorder %s182, %s183
      %p197 = scmp.eq.s32.totalorder %s33, 3
      %p198 = por %p196, %p197
      %p200 = scmp.ne.s32.totalorder %s183, %s199
      %p201 = scmp.eq.s32.totalorder %s33, 0
      %p202 = por %p200, %p201
      %s203 = ssub.s32 %s35, %s42
      %p204 = scmp.eq.s32.totalorder %s203, 0
      %s206 = sadd.s32 %s205, 1
      %s207 = scalar_select %p204, %s205, %s206
      %p210 = pneg %p204
      %p211 = scmp.eq.s32.totalorder %s27, 3
      %p212 = por %p210, %p211
      %p213 = scmp.ne.s32.totalorder %s205, %s208
      %p214 = scmp.eq.s32.totalorder %s27, 0
      %p215 = por %p213, %p214
      %p216 = scmp.ne.s32.totalorder %s205, %s208
      %p217 = scmp.eq.s32.totalorder %s32, 3
      %p218 = por %p216, %p217
      %p219 = scmp.ne.s32.totalorder %s208, %s209
      %p220 = scmp.eq.s32.totalorder %s32, 0
      %p221 = por %p219, %p220
      %p222 = scmp.ne.s32.totalorder %s208, %s209
      %p223 = scmp.eq.s32.totalorder %s33, 3
      %p224 = por %p222, %p223
      %p226 = scmp.ne.s32.totalorder %s209, %s225
      %p227 = scmp.eq.s32.totalorder %s33, 0
      %p228 = por %p226, %p227
      %s229 = ssub.s32 %s35, %s42
      %p230 = scmp.eq.s32.totalorder %s229, 0
      %s232 = sadd.s32 %s231, 1
      %s233 = scalar_select %p230, %s231, %s232
      %p236 = pneg %p230
      %p237 = scmp.eq.s32.totalorder %s27, 3
      %p238 = por %p236, %p237
      %p239 = scmp.ne.s32.totalorder %s231, %s234
      %p240 = scmp.eq.s32.totalorder %s27, 0
      %p241 = por %p239, %p240
      %p242 = scmp.ne.s32.totalorder %s231, %s234
      %p243 = scmp.eq.s32.totalorder %s32, 3
      %p244 = por %p242, %p243
      %p245 = scmp.ne.s32.totalorder %s234, %s235
      %p246 = scmp.eq.s32.totalorder %s32, 0
      %p247 = por %p245, %p246
      %p248 = scmp.ne.s32.totalorder %s234, %s235
      %p249 = scmp.eq.s32.totalorder %s33, 3
      %p250 = por %p248, %p249
      %p252 = scmp.ne.s32.totalorder %s235, %s251
      %p253 = scmp.eq.s32.totalorder %s33, 0
      %p254 = por %p252, %p253
      %s255 = ssub.s32 %s35, %s42
      %p256 = scmp.eq.s32.totalorder %s255, 0
      %s258 = sadd.s32 %s257, 1
      %s259 = scalar_select %p256, %s257, %s258
      %p262 = pneg %p256
      %p263 = scmp.eq.s32.totalorder %s27, 3
      %p264 = por %p262, %p263
      %p265 = scmp.ne.s32.totalorder %s257, %s260
      %p266 = scmp.eq.s32.totalorder %s27, 0
      %p267 = por %p265, %p266
      %p268 = scmp.ne.s32.totalorder %s257, %s260
      %p269 = scmp.eq.s32.totalorder %s32, 3
      %p270 = por %p268, %p269
      %p271 = scmp.ne.s32.totalorder %s260, %s261
      %p272 = scmp.eq.s32.totalorder %s32, 0
      %p273 = por %p271, %p272
      %p274 = scmp.ne.s32.totalorder %s260, %s261
      %p275 = scmp.eq.s32.totalorder %s33, 3
      %p276 = por %p274, %p275
      %p278 = scmp.ne.s32.totalorder %s261, %s277
      %p279 = scmp.eq.s32.totalorder %s33, 0
      %p280 = por %p278, %p279
      %s281 = ssub.s32 %s35, %s42
      %p282 = scmp.eq.s32.totalorder %s281, 0
      %s284 = sadd.s32 %s283, 1
      %s285 = scalar_select %p282, %s283, %s284
      %p288 = pneg %p282
      %p289 = scmp.eq.s32.totalorder %s27, 3
      %p290 = por %p288, %p289
      %p291 = scmp.ne.s32.totalorder %s283, %s286
      %p292 = scmp.eq.s32.totalorder %s27, 0
      %p293 = por %p291, %p292
      %p294 = scmp.ne.s32.totalorder %s283, %s286
      %p295 = scmp.eq.s32.totalorder %s32, 3
      %p296 = por %p294, %p295
      %p297 = scmp.ne.s32.totalorder %s286, %s287
      %p298 = scmp.eq.s32.totalorder %s32, 0
      %p299 = por %p297, %p298
      %p300 = scmp.ne.s32.totalorder %s286, %s287
      %p301 = scmp.eq.s32.totalorder %s33, 3
      %p302 = por %p300, %p301
      %p304 = scmp.ne.s32.totalorder %s287, %s303
      %p305 = scmp.eq.s32.totalorder %s33, 0
      %p306 = por %p304, %p305
      %s307 = ssub.s32 %s35, %s42
      %p308 = scmp.eq.s32.totalorder %s307, 0
      %s310 = sadd.s32 %s309, 1
      %s311 = scalar_select %p308, %s309, %s310
      %p314 = pneg %p308
      %p315 = scmp.eq.s32.totalorder %s27, 3
      %p316 = por %p314, %p315
      %p317 = scmp.ne.s32.totalorder %s309, %s312
      %p318 = scmp.eq.s32.totalorder %s27, 0
      %p319 = por %p317, %p318
      %p320 = scmp.ne.s32.totalorder %s309, %s312
      %p321 = scmp.eq.s32.totalorder %s32, 3
      %p322 = por %p320, %p321
      %p323 = scmp.ne.s32.totalorder %s312, %s313
      %p324 = scmp.eq.s32.totalorder %s32, 0
      %p325 = por %p323, %p324
      %p326 = scmp.ne.s32.totalorder %s312, %s313
      %p327 = scmp.eq.s32.totalorder %s33, 3
      %p328 = por %p326, %p327
      %p330 = scmp.ne.s32.totalorder %s313, %s329
      %p331 = scmp.eq.s32.totalorder %s33, 0
      %p332 = por %p330, %p331
      %s333 = ssub.s32 %s35, %s42
      %p334 = scmp.eq.s32.totalorder %s333, 0
      %s336 = sadd.s32 %s335, 1
      %s337 = scalar_select %p334, %s335, %s336
      %p340 = pneg %p334
      %p341 = scmp.eq.s32.totalorder %s27, 3
      %p342 = por %p340, %p341
      %p343 = scmp.ne.s32.totalorder %s335, %s338
      %p344 = scmp.eq.s32.totalorder %s27, 0
      %p345 = por %p343, %p344
      %p346 = scmp.ne.s32.totalorder %s335, %s338
      %p347 = scmp.eq.s32.totalorder %s32, 3
      %p348 = por %p346, %p347
      %p349 = scmp.ne.s32.totalorder %s338, %s339
      %p350 = scmp.eq.s32.totalorder %s32, 0
      %p351 = por %p349, %p350
      %p352 = scmp.ne.s32.totalorder %s338, %s339
      %p353 = scmp.eq.s32.totalorder %s33, 3
      %p354 = por %p352, %p353
      %p356 = scmp.ne.s32.totalorder %s339, %s355
      %p357 = scmp.eq.s32.totalorder %s33, 0
      %p358 = por %p356, %p357
      %s359 = ssub.s32 %s35, %s42
      %p360 = scmp.eq.s32.totalorder %s359, 0
      %s362 = sadd.s32 %s361, 1
      %s363 = scalar_select %p360, %s361, %s362
      %p366 = pneg %p360
      %p367 = scmp.eq.s32.totalorder %s27, 3
      %p368 = por %p366, %p367
      %p369 = scmp.ne.s32.totalorder %s361, %s364
      %p370 = scmp.eq.s32.totalorder %s27, 0
      %p371 = por %p369, %p370
      %p372 = scmp.ne.s32.totalorder %s361, %s364
      %p373 = scmp.eq.s32.totalorder %s32, 3
      %p374 = por %p372, %p373
      %p375 = scmp.ne.s32.totalorder %s364, %s365
      %p376 = scmp.eq.s32.totalorder %s32, 0
      %p377 = por %p375, %p376
      %p378 = scmp.ne.s32.totalorder %s364, %s365
      %p379 = scmp.eq.s32.totalorder %s33, 3
      %p380 = por %p378, %p379
      %p382 = scmp.ne.s32.totalorder %s365, %s381
      %p383 = scmp.eq.s32.totalorder %s33, 0
      %p384 = por %p382, %p383
      %s385 = ssub.s32 %s35, %s42
      %p386 = scmp.eq.s32.totalorder %s385, 0
      %s388 = sadd.s32 %s387, 1
      %s389 = scalar_select %p386, %s387, %s388
      %p392 = pneg %p386
      %p393 = scmp.eq.s32.totalorder %s27, 3
      %p394 = por %p392, %p393
      %p395 = scmp.ne.s32.totalorder %s387, %s390
      %p396 = scmp.eq.s32.totalorder %s27, 0
      %p397 = por %p395, %p396
      %p398 = scmp.ne.s32.totalorder %s387, %s390
      %p399 = scmp.eq.s32.totalorder %s32, 3
      %p400 = por %p398, %p399
      %p401 = scmp.ne.s32.totalorder %s390, %s391
      %p402 = scmp.eq.s32.totalorder %s32, 0
      %p403 = por %p401, %p402
      %p404 = scmp.ne.s32.totalorder %s390, %s391
      %p405 = scmp.eq.s32.totalorder %s33, 3
      %p406 = por %p404, %p405
      %p408 = scmp.ne.s32.totalorder %s391, %s407
      %p409 = scmp.eq.s32.totalorder %s33, 0
      %p410 = por %p408, %p409
      %s411 = ssub.s32 %s35, %s42
      %p412 = scmp.eq.s32.totalorder %s411, 0
      %s414 = sadd.s32 %s413, 1
      %s415 = scalar_select %p412, %s413, %s414
      %p418 = pneg %p412
      %p419 = scmp.eq.s32.totalorder %s27, 3
      %p420 = por %p418, %p419
      %p421 = scmp.ne.s32.totalorder %s413, %s416
      %p422 = scmp.eq.s32.totalorder %s27, 0
      %p423 = por %p421, %p422
      %p424 = scmp.ne.s32.totalorder %s413, %s416
      %p425 = scmp.eq.s32.totalorder %s32, 3
      %p426 = por %p424, %p425
      %p427 = scmp.ne.s32.totalorder %s416, %s417
      %p428 = scmp.eq.s32.totalorder %s32, 0
      %p429 = por %p427, %p428
      %p430 = scmp.ne.s32.totalorder %s416, %s417
      %p431 = scmp.eq.s32.totalorder %s33, 3
      %p432 = por %p430, %p431
      %p434 = scmp.ne.s32.totalorder %s417, %s433
      %p435 = scmp.eq.s32.totalorder %s33, 0
      %p436 = por %p434, %p435
      %s437 = ssub.s32 %s34, %s46
      %p438 = scmp.eq.s32.totalorder %s437, 0
      %s440 = sadd.s32 %s439, 1
      %s441 = scalar_select %p438, %s439, %s440
      %p444 = pneg %p438
      %p445 = scmp.eq.s32.totalorder %s27, 3
      %p446 = por %p444, %p445
      %p447 = scmp.ne.s32.totalorder %s439, %s442
      %p448 = scmp.eq.s32.totalorder %s27, 0
      %p449 = por %p447, %p448
      %p450 = scmp.ne.s32.totalorder %s439, %s442
      %p451 = scmp.eq.s32.totalorder %s32, 3
      %p452 = por %p450, %p451
      %p453 = scmp.ne.s32.totalorder %s442, %s443
      %p454 = scmp.eq.s32.totalorder %s32, 0
      %p455 = por %p453, %p454
      %p456 = scmp.ne.s32.totalorder %s442, %s443
      %p457 = scmp.eq.s32.totalorder %s33, 3
      %p458 = por %p456, %p457
      %p460 = scmp.ne.s32.totalorder %s443, %s459
      %p461 = scmp.eq.s32.totalorder %s33, 0
      %p462 = por %p460, %p461
      %p463 = scmp.le.s32.totalorder 1, %s27
      %p464 = scmp.lt.s32.totalorder %s27, 5
      %p465 = pnand %p463, %p464
      %p466 = pneg %p465
      // Predicated region
      $region9: #{tpu_custom_call.1} parent=5 // pred_check
        _
      $region10: #{tpu_custom_call.1} parent=5 // pred_check_branch
        %468 = sbr.rel (%p465) target = $region12
      $region11: #{tpu_custom_call.1} parent=5 // pred_region
        %s469 = ssub.s32 %s27, 1
      $region12: #{tpu_custom_call.1} parent=5 // pred_fallthru
        _
      %p470 = scmp.lt.s32.totalorder %s27, 4
      // Predicated region
      $region13: #{tpu_custom_call.1} parent=5 // pred_check
        %p471 = pneg %p470
      $region14: #{tpu_custom_call.1} parent=5 // pred_check_branch
        %473 = sbr.rel (%p471) target = $region16
      $region15: #{tpu_custom_call.1} parent=5 // pred_region
        // Predicated region
        $region17: #{tpu_custom_call.1} parent=15 // pred_check
          %p474 = pneg %p59
        $region18: #{tpu_custom_call.1} parent=15 // pred_check_branch
          %476 = sbr.rel (%p474) target = $region20
        $region19: #{tpu_custom_call.1} parent=15 // pred_region
          %p477 = scmp.lt.s32.totalorder %s34, 1
          %s478 = scalar_select %p477, %s34, 1
          %s479 = smul.addr %s478, 8
          %s480 = scalar_lea.vmem %s0, %s479
        $region20: #{tpu_custom_call.1} parent=15 // pred_fallthru
          _
        // Predicated region
        $region21: #{tpu_custom_call.1} parent=15 // pred_check
          %p481 = pneg %p85
        $region22: #{tpu_custom_call.1} parent=15 // pred_check_branch
          %483 = sbr.rel (%p481) target = $region24
        $region23: #{tpu_custom_call.1} parent=15 // pred_region
          %p484 = scmp.lt.s32.totalorder %s34, 1
          %s485 = scalar_select %p484, %s34, 1
          %s486 = scalar_lea.vmem %s1, %s485
        $region24: #{tpu_custom_call.1} parent=15 // pred_fallthru
          _
        // Predicated region
        $region25: #{tpu_custom_call.1} parent=15 // pred_check
          %p487 = pneg %p111
        $region26: #{tpu_custom_call.1} parent=15 // pred_check_branch
          %489 = sbr.rel (%p487) target = $region28
        $region27: #{tpu_custom_call.1} parent=15 // pred_region
          %p490 = scmp.lt.s32.totalorder %s34, 1
          %s491 = scalar_select %p490, %s34, 1
          %s492 = smul.addr %s491, 8
          %s493 = scalar_lea.vmem %s2, %s492
        $region28: #{tpu_custom_call.1} parent=15 // pred_fallthru
          _
        // Predicated region
        $region29: #{tpu_custom_call.1} parent=15 // pred_check
          %p494 = pneg %p137
        $region30: #{tpu_custom_call.1} parent=15 // pred_check_branch
          %496 = sbr.rel (%p494) target = $region32
        $region31: #{tpu_custom_call.1} parent=15 // pred_region
          %p497 = scmp.lt.s32.totalorder %s35, 1
          %s498 = scalar_select %p497, %s35, 1
          %s499 = smul.addr %s498, 4
          %s500 = smul.addr %s499, 4
          %s501 = scalar_lea.vmem %s3, %s500
        $region32: #{tpu_custom_call.1} parent=15 // pred_fallthru
          _
        // Predicated region
        $region33: #{tpu_custom_call.1} parent=15 // pred_check
          %p502 = pneg %p163
        $region34: #{tpu_custom_call.1} parent=15 // pred_check_branch
          %504 = sbr.rel (%p502) target = $region36
        $region35: #{tpu_custom_call.1} parent=15 // pred_region
          %p505 = scmp.lt.s32.totalorder %s35, 1
          %s506 = scalar_select %p505, %s35, 1
          %s507 = scalar_lea.vmem %s4, %s506
        $region36: #{tpu_custom_call.1} parent=15 // pred_fallthru
          _
        // Predicated region
        $region37: #{tpu_custom_call.1} parent=15 // pred_check
          %p508 = pneg %p189
        $region38: #{tpu_custom_call.1} parent=15 // pred_check_branch
          %510 = sbr.rel (%p508) target = $region40
        $region39: #{tpu_custom_call.1} parent=15 // pred_region
          %p511 = scmp.lt.s32.totalorder %s35, 1
          %s512 = scalar_select %p511, %s35, 1
          %s513 = smul.addr %s512, 4
          %s514 = smul.addr %s513, 4
          %s515 = scalar_lea.vmem %s5, %s514
        $region40: #{tpu_custom_call.1} parent=15 // pred_fallthru
          _
        // Predicated region
        $region41: #{tpu_custom_call.1} parent=15 // pred_check
          %p516 = pneg %p215
        $region42: #{tpu_custom_call.1} parent=15 // pred_check_branch
          %518 = sbr.rel (%p516) target = $region44
        $region43: #{tpu_custom_call.1} parent=15 // pred_region
          %p519 = scmp.lt.s32.totalorder %s35, 1
          %s520 = scalar_select %p519, %s35, 1
          %s521 = scalar_lea.vmem %s6, %s520
        $region44: #{tpu_custom_call.1} parent=15 // pred_fallthru
          _
        // Predicated region
        $region45: #{tpu_custom_call.1} parent=15 // pred_check
          %p522 = pneg %p241
        $region46: #{tpu_custom_call.1} parent=15 // pred_check_branch
          %524 = sbr.rel (%p522) target = $region48
        $region47: #{tpu_custom_call.1} parent=15 // pred_region
          %p525 = scmp.lt.s32.totalorder %s35, 1
          %s526 = scalar_select %p525, %s35, 1
          %s527 = scalar_lea.vmem %s7, %s526
        $region48: #{tpu_custom_call.1} parent=15 // pred_fallthru
          _
        // Predicated region
        $region49: #{tpu_custom_call.1} parent=15 // pred_check
          %p528 = pneg %p267
        $region50: #{tpu_custom_call.1} parent=15 // pred_check_branch
          %530 = sbr.rel (%p528) target = $region52
        $region51: #{tpu_custom_call.1} parent=15 // pred_region
          %p531 = scmp.lt.s32.totalorder %s35, 1
          %s532 = scalar_select %p531, %s35, 1
          %s533 = scalar_lea.vmem %s8, %s532
        $region52: #{tpu_custom_call.1} parent=15 // pred_fallthru
          _
        // Predicated region
        $region53: #{tpu_custom_call.1} parent=15 // pred_check
          %p534 = pneg %p293
        $region54: #{tpu_custom_call.1} parent=15 // pred_check_branch
          %536 = sbr.rel (%p534) target = $region56
        $region55: #{tpu_custom_call.1} parent=15 // pred_region
          %s537 = sand.u32 %s283, 1
          %s538 = scalar_lea.sflag [#allocation4], %s537
          %s539 = sand.u32 %s283, 1
          %s540 = smul.addr %s539, 144
          %s541 = scalar_lea.vmem [#allocation3], %s540
          %s543 = ssub.s32 2304, 2304
          %544 = vsyncadd %s538, %s543
          %s545 = smul.addr %s35, 36
          %s546 = smul.addr %s545, 64
          %s547 = scalar_lea.hbm %s9, %s546
          %s548 = sshll.u32 %s541, 4
          %s549 = int_to_ptr.vmem [resolvable:$true] %s548
          %554 = dma.hbm_to_vmem [thread:$0]  %s547, 2304, %s549, %s538, 64, 64, 4
        $region56: #{tpu_custom_call.1} parent=15 // pred_fallthru
          _
        // Predicated region
        $region57: #{tpu_custom_call.1} parent=15 // pred_check
          %p555 = pneg %p319
        $region58: #{tpu_custom_call.1} parent=15 // pred_check_branch
          %557 = sbr.rel (%p555) target = $region60
        $region59: #{tpu_custom_call.1} parent=15 // pred_region
          %p558 = scmp.lt.s32.totalorder %s35, 1
          %s559 = scalar_select %p558, %s35, 1
          %s560 = scalar_lea.vmem %s10, %s559
        $region60: #{tpu_custom_call.1} parent=15 // pred_fallthru
          _
        // Predicated region
        $region61: #{tpu_custom_call.1} parent=15 // pred_check
          %p561 = pneg %p345
        $region62: #{tpu_custom_call.1} parent=15 // pred_check_branch
          %563 = sbr.rel (%p561) target = $region64
        $region63: #{tpu_custom_call.1} parent=15 // pred_region
          %p564 = scmp.lt.s32.totalorder %s35, 1
          %s565 = scalar_select %p564, %s35, 1
          %s566 = smul.addr %s565, 8
          %s567 = smul.addr %s566, 4
          %s568 = scalar_lea.vmem %s11, %s567
        $region64: #{tpu_custom_call.1} parent=15 // pred_fallthru
          _
        // Predicated region
        $region65: #{tpu_custom_call.1} parent=15 // pred_check
          %p569 = pneg %p371
        $region66: #{tpu_custom_call.1} parent=15 // pred_check_branch
          %571 = sbr.rel (%p569) target = $region68
        $region67: #{tpu_custom_call.1} parent=15 // pred_region
          %p572 = scmp.lt.s32.totalorder %s35, 1
          %s573 = scalar_select %p572, %s35, 1
          %s574 = scalar_lea.vmem %s12, %s573
        $region68: #{tpu_custom_call.1} parent=15 // pred_fallthru
          _
        // Predicated region
        $region69: #{tpu_custom_call.1} parent=15 // pred_check
          %p575 = pneg %p397
        $region70: #{tpu_custom_call.1} parent=15 // pred_check_branch
          %577 = sbr.rel (%p575) target = $region72
        $region71: #{tpu_custom_call.1} parent=15 // pred_region
          %p578 = scmp.lt.s32.totalorder %s35, 1
          %s579 = scalar_select %p578, %s35, 1
          %s580 = scalar_lea.vmem %s13, %s579
        $region72: #{tpu_custom_call.1} parent=15 // pred_fallthru
          _
        // Predicated region
        $region73: #{tpu_custom_call.1} parent=15 // pred_check
          %p581 = pneg %p423
        $region74: #{tpu_custom_call.1} parent=15 // pred_check_branch
          %583 = sbr.rel (%p581) target = $region76
        $region75: #{tpu_custom_call.1} parent=15 // pred_region
          %p584 = scmp.lt.s32.totalorder %s35, 1
          %s585 = scalar_select %p584, %s35, 1
          %s586 = scalar_lea.vmem %s14, %s585
        $region76: #{tpu_custom_call.1} parent=15 // pred_fallthru
          _
      $region16: #{tpu_custom_call.1} parent=5 // pred_fallthru
        _
      %p587 = scmp.le.s32.totalorder 1, %s27
      %p588 = scmp.lt.s32.totalorder %s27, 5
      %p589 = pnand %p587, %p588
      %p590 = pneg %p589
      // Predicated region
      $region77: #{tpu_custom_call.1} parent=5 // pred_check
        _
      $region78: #{tpu_custom_call.1} parent=5 // pred_check_branch
        %592 = sbr.rel (%p589) target = $region80
      $region79: #{tpu_custom_call.1} parent=5 // pred_region
        %s593 = ssub.s32 %s27, 1
        %s594 = sand.u32 %s286, 1
        %s595 = scalar_lea.sflag [#allocation4], %s594
        %s596 = sand.u32 %s286, 1
        %s597 = smul.addr %s596, 144
        %s598 = scalar_lea.vmem [#allocation3], %s597
        // Predicated region
        $region81: #{tpu_custom_call.1} parent=79 // pred_check
          %p599 = pneg %p299
        $region82: #{tpu_custom_call.1} parent=79 // pred_check_branch
          %601 = sbr.rel (%p599) target = $region84
        $region83: #{tpu_custom_call.1} parent=79 // pred_region
          %602 = dma.done %s595, 2304
        $region84: #{tpu_custom_call.1} parent=79 // pred_fallthru
          _
        %p603 = scmp.lt.s32.totalorder %s36, 1
        %s604 = scalar_select %p603, %s36, 1
        %s605 = smul.addr %s604, 8
        %s606 = scalar_lea.vmem %s0, %s605
        %p607 = pneg %p65
        %p608 = pneg %p62
        %p609 = scmp.lt.s32.totalorder %s36, 1
        %s610 = scalar_select %p609, %s36, 1
        %s611 = scalar_lea.vmem %s1, %s610
        %p612 = pneg %p91
        %p613 = pneg %p88
        %p614 = scmp.lt.s32.totalorder %s36, 1
        %s615 = scalar_select %p614, %s36, 1
        %s616 = smul.addr %s615, 8
        %s617 = scalar_lea.vmem %s2, %s616
        %p618 = pneg %p117
        %p619 = pneg %p114
        %p620 = scmp.lt.s32.totalorder %s37, 1
        %s621 = scalar_select %p620, %s37, 1
        %s622 = smul.addr %s621, 4
        %s623 = smul.addr %s622, 4
        %s624 = scalar_lea.vmem %s3, %s623
        %p625 = pneg %p143
        %p626 = pneg %p140
        %p627 = scmp.lt.s32.totalorder %s37, 1
        %s628 = scalar_select %p627, %s37, 1
        %s629 = scalar_lea.vmem %s4, %s628
        %p630 = pneg %p169
        %p631 = pneg %p166
        %p632 = scmp.lt.s32.totalorder %s37, 1
        %s633 = scalar_select %p632, %s37, 1
        %s634 = smul.addr %s633, 4
        %s635 = smul.addr %s634, 4
        %s636 = scalar_lea.vmem %s5, %s635
        %p637 = pneg %p195
        %p638 = pneg %p192
        %p639 = scmp.lt.s32.totalorder %s37, 1
        %s640 = scalar_select %p639, %s37, 1
        %s641 = scalar_lea.vmem %s6, %s640
        %p642 = pneg %p221
        %p643 = pneg %p218
        %p644 = scmp.lt.s32.totalorder %s37, 1
        %s645 = scalar_select %p644, %s37, 1
        %s646 = scalar_lea.vmem %s7, %s645
        %p647 = pneg %p247
        %p648 = pneg %p244
        %p649 = scmp.lt.s32.totalorder %s37, 1
        %s650 = scalar_select %p649, %s37, 1
        %s651 = scalar_lea.vmem %s8, %s650
        %p652 = pneg %p273
        %p653 = pneg %p270
        %s654 = sand.u32 %s286, 1
        %s655 = scalar_lea.sflag [#allocation4], %s654
        %s656 = sand.u32 %s286, 1
        %s657 = smul.addr %s656, 144
        %s658 = scalar_lea.vmem [#allocation3], %s657
        %p659 = pneg %p299
        %p660 = pneg %p296
        %p661 = scmp.lt.s32.totalorder %s37, 1
        %s662 = scalar_select %p661, %s37, 1
        %s663 = scalar_lea.vmem %s10, %s662
        %p664 = pneg %p325
        %p665 = pneg %p322
        %p666 = scmp.lt.s32.totalorder %s37, 1
        %s667 = scalar_select %p666, %s37, 1
        %s668 = smul.addr %s667, 8
        %s669 = smul.addr %s668, 4
        %s670 = scalar_lea.vmem %s11, %s669
        %p671 = pneg %p351
        %p672 = pneg %p348
        %p673 = scmp.lt.s32.totalorder %s37, 1
        %s674 = scalar_select %p673, %s37, 1
        %s675 = scalar_lea.vmem %s12, %s674
        %p676 = pneg %p377
        %p677 = pneg %p374
        %p678 = scmp.lt.s32.totalorder %s37, 1
        %s679 = scalar_select %p678, %s37, 1
        %s680 = scalar_lea.vmem %s13, %s679
        %p681 = pneg %p403
        %p682 = pneg %p400
        %p683 = scmp.lt.s32.totalorder %s37, 1
        %s684 = scalar_select %p683, %s37, 1
        %s685 = scalar_lea.vmem %s14, %s684
        %p686 = pneg %p429
        %p687 = pneg %p426
        %p688 = pneg %p455
        %p689 = pneg %p452
        %s690 = sand.u32 %s442, 1
        %s691 = scalar_lea.sflag [#allocation5], %s690
        %s692 = sand.u32 %s442, 1
        %s693 = smul.addr %s692, 8
        %s694 = scalar_lea.vmem [#allocation6], %s693
        %p695 = scmp.lt.s32.totalorder %s36, 1
        %s696 = scalar_select %p695, %s36, 1
        %s697 = smul.addr %s696, 8
        %s698 = scalar_lea.vmem %s0, %s697
        %p699 = scmp.lt.s32.totalorder %s36, 1
        %s700 = scalar_select %p699, %s36, 1
        %s701 = scalar_lea.vmem %s1, %s700
        %p702 = scmp.lt.s32.totalorder %s36, 1
        %s703 = scalar_select %p702, %s36, 1
        %s704 = smul.addr %s703, 8
        %s705 = scalar_lea.vmem %s2, %s704
        %p706 = scmp.lt.s32.totalorder %s37, 1
        %s707 = scalar_select %p706, %s37, 1
        %s708 = smul.addr %s707, 4
        %s709 = smul.addr %s708, 4
        %s710 = scalar_lea.vmem %s3, %s709
        %p711 = scmp.lt.s32.totalorder %s37, 1
        %s712 = scalar_select %p711, %s37, 1
        %s713 = scalar_lea.vmem %s4, %s712
        %p714 = scmp.lt.s32.totalorder %s37, 1
        %s715 = scalar_select %p714, %s37, 1
        %s716 = smul.addr %s715, 4
        %s717 = smul.addr %s716, 4
        %s718 = scalar_lea.vmem %s5, %s717
        %p719 = scmp.lt.s32.totalorder %s37, 1
        %s720 = scalar_select %p719, %s37, 1
        %s721 = scalar_lea.vmem %s6, %s720
        %p722 = scmp.lt.s32.totalorder %s37, 1
        %s723 = scalar_select %p722, %s37, 1
        %s724 = scalar_lea.vmem %s7, %s723
        %p725 = scmp.lt.s32.totalorder %s37, 1
        %s726 = scalar_select %p725, %s37, 1
        %s727 = scalar_lea.vmem %s8, %s726
        %p728 = scmp.lt.s32.totalorder %s37, 1
        %s729 = scalar_select %p728, %s37, 1
        %s730 = scalar_lea.vmem %s10, %s729
        %p731 = scmp.lt.s32.totalorder %s37, 1
        %s732 = scalar_select %p731, %s37, 1
        %s733 = smul.addr %s732, 8
        %s734 = smul.addr %s733, 4
        %s735 = scalar_lea.vmem %s11, %s734
        %p736 = scmp.lt.s32.totalorder %s37, 1
        %s737 = scalar_select %p736, %s37, 1
        %s738 = scalar_lea.vmem %s12, %s737
        %p739 = scmp.lt.s32.totalorder %s37, 1
        %s740 = scalar_select %p739, %s37, 1
        %s741 = scalar_lea.vmem %s13, %s740
        %p742 = scmp.lt.s32.totalorder %s37, 1
        %s743 = scalar_select %p742, %s37, 1
        %s744 = scalar_lea.vmem %s14, %s743
        %p746 = scmp.eq.s32.totalorder %s37, 0
        // Predicated region
        $region85: #{tpu_custom_call.1} parent=79 // pred_check
          %p747 = pneg %p746
        $region86: #{tpu_custom_call.1} parent=79 // pred_check_branch
          %749 = sbr.rel (%p747) target = $region88
        $region87: #{tpu_custom_call.1} parent=79 // pred_region
          %v750 = vld [vmem:[%s698] sm:$0xff]
          %vm751 = vcmask 261120
          %752 = vst.msk [vmem:[%s694] sm:$0xff] %vm751, %v750
          %vm753 = vcmask 257024
          %754 = vst.msk [vmem:[#allocation2] sm:$0xf] %vm753, 0
          %755 = vst.msk [vmem:[#allocation2 + $0x4] sm:$0xf] %vm753, 0
        $region88: #{tpu_custom_call.1} parent=79 // pred_fallthru
          _
        %v756 = vld [vmem:[%s694] sm:$0xff]
        %v757 = vpack.c.bf16 %v756, %v756
        %v758 = vld [vmem:[%s701] sm:$0x1]
        %v759 = vld [vmem:[%s705] sm:$0xff]
        %v760 = vld [vmem:[%s710] sm:$0xf]
        %v761 = vld [vmem:[%s710 + $0x4] sm:$0xf]
        %v762 = vld [vmem:[%s710 + $0x8] sm:$0xf]
        %v763 = vld [vmem:[%s710 + $0xc] sm:$0xf]
        %v764 = vld [vmem:[%s713] sm:$0x1]
        %v766 = vlaneseq
        %v767 = vshrl.u32 %v766, 7
        %v768 = vsub.s32 0, %v767
        %v769 = vrot.slane %v764, %v768
        %v775 = vunpack.c.l.b16 %v760
        %v776 = vunpack.c.l.b16 %v761
        %v777 = vunpack.c.l.b16 %v762
        %v778 = vunpack.c.l.b16 %v763
        %v779 = vpack.c.b16 %v776, %v775
        %v780 = vpack.c.b16 %v778, %v777
        %vm783 = vcmask 261120
        %v785 = vsel %vm783, %v757, 0
        %787 = vmatprep.subr.bf16.mxu0 0
        %788 = vmatpush1.bf16.msra.mxu0 0
        %789 = vmatprep.subr.bf16.mxu0 0
        %790 = vmatpush1.bf16.msra.mxu0 0
        %791 = vmatprep.subr.bf16.mxu0 0
        %792 = vmatpush1.bf16.msra.mxu0 0
        %793 = vmatprep.subr.bf16.mxu0 0
        %794 = vmatpush1.bf16.msra.mxu0 0
        %795 = vmatprep.subr.bf16.mxu0 0
        %796 = vmatpush1.bf16.msra.mxu0 0
        %797 = vmatprep.subr.bf16.mxu0 0
        %798 = vmatpush1.bf16.msra.mxu0 0
        %799 = vmatprep.subr.bf16.mxu0 0
        %800 = vmatpush1.bf16.msra.mxu0 %v780
        %801 = vmatprep.subr.bf16.mxu0 0
        %802 = vmatpush1.bf16.msra.mxu0 %v779
        %803 = vmatprep.subr.bf16.mxu0 0
        %804 = vmatpush2.bf16.msra.mxu0 0
        %805 = vmatprep.subr.bf16.mxu0 0
        %806 = vmatpush2.bf16.msra.mxu0 0
        %807 = vmatprep.subr.bf16.mxu0 0
        %808 = vmatpush2.bf16.msra.mxu0 0
        %809 = vmatprep.subr.bf16.mxu0 0
        %810 = vmatpush2.bf16.msra.mxu0 0
        %811 = vmatprep.subr.bf16.mxu0 0
        %812 = vmatpush2.bf16.msra.mxu0 0
        %813 = vmatprep.subr.bf16.mxu0 0
        %814 = vmatpush2.bf16.msra.mxu0 0
        %815 = vmatprep.subr.bf16.mxu0 0
        %816 = vmatpush2.bf16.msra.mxu0 0
        %817 = vmatprep.subr.bf16.mxu0 0
        %818 = vmatpush2.bf16.msra.mxu0 0
        %819 = vmatprep.mubr.bf16.mxu0 0
        %820 = vmatmul.mubr.bf16.gmra.mxu0 %v785
        %v821 = vpop.f32.mrf.mxu0
        %v822 = vadd.f32 %v769, %v821
        %v823 = vpop.f32.mrf.mxu0
        %v824 = vpop.f32.mrf.mxu0
        %v825 = vpop.f32.mrf.mxu0
        %826 = vdwg.mxu0
        %828 = vrot.lane.b32.xlu0 %v822, 112
        %v829 = vpop.permute.xlu0 %828
        %v831 = vmul.f32 %v822, 0.25
        %v832 = vmul.f32 %v829, 0.25
        %v833 = vpack.c.bf16 %v831, %v831
        %v834 = vpack.c.bf16 %v832, %v832
        %v835 = vpack.c.bf16 %v822, %v822
        %v836 = vpack.c.bf16 %v829, %v829
        %v838 = vlaneseq
        %v839 = vshrl.u32 %v838, 7
        %v840 = vsub.s32 0, %v839
        %v841 = vrot.slane %v758, %v840
        %844 = vrot.lane.b32.xlu0 %v835, 96
        %v845 = vpop.permute.xlu0 %844
        %vm846 = vcmask 130048
        %v848 = vsel %vm846, %v833, 0
        %v851 = vsel %vm846, %v845, 0
        %853 = vmatprep.subr.bf16.mxu0 0
        %854 = vmatpush1.bf16.xpose.msra.mxu0 0
        %855 = vmatprep.subr.bf16.mxu0 0
        %856 = vmatpush1.bf16.xpose.msra.mxu0 0
        %857 = vmatprep.subr.bf16.mxu0 0
        %858 = vmatpush1.bf16.xpose.msra.mxu0 0
        %859 = vmatprep.subr.bf16.mxu0 0
        %860 = vmatpush1.bf16.xpose.msra.mxu0 0
        %861 = vmatprep.subr.bf16.mxu0 0
        %862 = vmatpush1.bf16.xpose.msra.mxu0 0
        %863 = vmatprep.subr.bf16.mxu0 0
        %864 = vmatpush1.bf16.xpose.msra.mxu0 0
        %865 = vmatprep.subr.bf16.mxu0 0
        %866 = vmatpush1.bf16.xpose.msra.mxu0 0
        %867 = vmatprep.subr.bf16.mxu0 0
        %868 = vmatpush1.bf16.xpose.msra.mxu0 %v851
        %869 = vmatprep.subr.bf16.mxu0 0
        %870 = vmatpush2.bf16.xpose.msra.mxu0 0
        %871 = vmatprep.subr.bf16.mxu0 0
        %872 = vmatpush2.bf16.xpose.msra.mxu0 0
        %873 = vmatprep.subr.bf16.mxu0 0
        %874 = vmatpush2.bf16.xpose.msra.mxu0 0
        %875 = vmatprep.subr.bf16.mxu0 0
        %876 = vmatpush2.bf16.xpose.msra.mxu0 0
        %877 = vmatprep.subr.bf16.mxu0 0
        %878 = vmatpush2.bf16.xpose.msra.mxu0 0
        %879 = vmatprep.subr.bf16.mxu0 0
        %880 = vmatpush2.bf16.xpose.msra.mxu0 0
        %881 = vmatprep.subr.bf16.mxu0 0
        %882 = vmatpush2.bf16.xpose.msra.mxu0 0
        %883 = vmatprep.subr.bf16.mxu0 0
        %884 = vmatpush2.bf16.xpose.msra.mxu0 0
        %885 = vmatprep.mubr.bf16.mxu0 0
        %886 = vmatmul.mubr.bf16.gmra.mxu0 %v848
        %v887 = vpop.f32.mrf.mxu0
        %v888 = vadd.f32 %v841, %v887
        %v889 = vpop.f32.mrf.mxu0
        %v890 = vpop.f32.mrf.mxu0
        %v891 = vpop.f32.mrf.mxu0
        %892 = vdwg.mxu0
        %894 = vrot.lane.b32.xlu0 %v836, 96
        %v895 = vpop.permute.xlu0 %894
        %v897 = vsel %vm846, %v834, 0
        %v900 = vsel %vm846, %v895, 0
        %902 = vmatprep.subr.bf16.mxu0 0
        %903 = vmatpush1.bf16.xpose.msra.mxu0 0
        %904 = vmatprep.subr.bf16.mxu0 0
        %905 = vmatpush1.bf16.xpose.msra.mxu0 0
        %906 = vmatprep.subr.bf16.mxu0 0
        %907 = vmatpush1.bf16.xpose.msra.mxu0 0
        %908 = vmatprep.subr.bf16.mxu0 0
        %909 = vmatpush1.bf16.xpose.msra.mxu0 0
        %910 = vmatprep.subr.bf16.mxu0 0
        %911 = vmatpush1.bf16.xpose.msra.mxu0 0
        %912 = vmatprep.subr.bf16.mxu0 0
        %913 = vmatpush1.bf16.xpose.msra.mxu0 0
        %914 = vmatprep.subr.bf16.mxu0 0
        %915 = vmatpush1.bf16.xpose.msra.mxu0 0
        %916 = vmatprep.subr.bf16.mxu0 0
        %917 = vmatpush1.bf16.xpose.msra.mxu0 %v900
        %918 = vmatprep.subr.bf16.mxu0 0
        %919 = vmatpush2.bf16.xpose.msra.mxu0 0
        %920 = vmatprep.subr.bf16.mxu0 0
        %921 = vmatpush2.bf16.xpose.msra.mxu0 0
        %922 = vmatprep.subr.bf16.mxu0 0
        %923 = vmatpush2.bf16.xpose.msra.mxu0 0
        %924 = vmatprep.subr.bf16.mxu0 0
        %925 = vmatpush2.bf16.xpose.msra.mxu0 0
        %926 = vmatprep.subr.bf16.mxu0 0
        %927 = vmatpush2.bf16.xpose.msra.mxu0 0
        %928 = vmatprep.subr.bf16.mxu0 0
        %929 = vmatpush2.bf16.xpose.msra.mxu0 0
        %930 = vmatprep.subr.bf16.mxu0 0
        %931 = vmatpush2.bf16.xpose.msra.mxu0 0
        %932 = vmatprep.subr.bf16.mxu0 0
        %933 = vmatpush2.bf16.xpose.msra.mxu0 0
        %934 = vmatprep.mubr.bf16.mxu0 0
        %935 = vmatmul.mubr.bf16.gmra.mxu0 %v897
        %v936 = vpop.f32.mrf.mxu0
        %v937 = vadd.f32 %v841, %v936
        %v938 = vpop.f32.mrf.mxu0
        %v939 = vpop.f32.mrf.mxu0
        %v940 = vpop.f32.mrf.mxu0
        %941 = vdwg.mxu0
        %vm942 = vcmask 64512
        %v943 = vsel %vm942, %v888, -inf
        %944 = vmax.xlane.f32.xlu0 %v943
        %v945 = vpop.xlane.xlu0 %944
        %v946 = vsel %vm942, %v937, -inf
        %947 = vmax.xlane.f32.xlu0 %v946
        %v948 = vpop.xlane.xlu0 %947
        %v949 = vsub.f32 %v888, %v945
        %v950 = vsub.f32 %v937, %v948
        %v951 = vmul.f32 %v949, 1.442695
        %v952 = vpow.pop %v951
        %v953 = vmul.f32 %v950, 1.442695
        %v954 = vpow.pop %v953
        %v955 = vsel %vm942, %v952, 0.0
        %956 = vadd.xlane.f32.xlu0 %v955
        %v957 = vpop.xlane.xlu0 %956
        %v958 = vsel %vm942, %v954, 0.0
        %959 = vadd.xlane.f32.xlu0 %v958
        %v960 = vpop.xlane.xlu0 %959
        %v961 = vrcp.pop %v957
        %v962 = vrcp.pop %v960
        %v963 = vmul.f32 %v952, %v961
        %v964 = vmul.f32 %v954, %v962
        %v965 = vpack.c.bf16 %v963, %v963
        %v966 = vpack.c.bf16 %v964, %v964
        %967 = vrot.lane.b32.xlu0 %v835, 64
        %v968 = vpop.permute.xlu0 %967
        %v970 = vsel %vm942, %v965, 0
        %vm972 = vcmask 1043456
        %v974 = vsel %vm972, %v968, 0
        %976 = vmatprep.subr.bf16.mxu0 0
        %977 = vmatpush1.bf16.msra.mxu0 0
        %978 = vmatprep.subr.bf16.mxu0 0
        %979 = vmatpush1.bf16.msra.mxu0 0
        %980 = vmatprep.subr.bf16.mxu0 0
        %981 = vmatpush1.bf16.msra.mxu0 0
        %982 = vmatprep.subr.bf16.mxu0 0
        %983 = vmatpush1.bf16.msra.mxu0 0
        %984 = vmatprep.subr.bf16.mxu0 0
        %985 = vmatpush1.bf16.msra.mxu0 0
        %986 = vmatprep.subr.bf16.mxu0 0
        %987 = vmatpush1.bf16.msra.mxu0 0
        %988 = vmatprep.subr.bf16.mxu0 0
        %989 = vmatpush1.bf16.msra.mxu0 0
        %990 = vmatprep.subr.bf16.mxu0 0
        %991 = vmatpush1.bf16.msra.mxu0 %v974
        %992 = vmatprep.subr.bf16.mxu0 0
        %993 = vmatpush2.bf16.msra.mxu0 0
        %994 = vmatprep.subr.bf16.mxu0 0
        %995 = vmatpush2.bf16.msra.mxu0 0
        %996 = vmatprep.subr.bf16.mxu0 0
        %997 = vmatpush2.bf16.msra.mxu0 0
        %998 = vmatprep.subr.bf16.mxu0 0
        %999 = vmatpush2.bf16.msra.mxu0 0
        %1000 = vmatprep.subr.bf16.mxu0 0
        %1001 = vmatpush2.bf16.msra.mxu0 0
        %1002 = vmatprep.subr.bf16.mxu0 0
        %1003 = vmatpush2.bf16.msra.mxu0 0
        %1004 = vmatprep.subr.bf16.mxu0 0
        %1005 = vmatpush2.bf16.msra.mxu0 0
        %1006 = vmatprep.subr.bf16.mxu0 0
        %1007 = vmatpush2.bf16.msra.mxu0 0
        %1008 = vmatprep.mubr.bf16.mxu0 0
        %1009 = vmatmul.mubr.bf16.gmra.mxu0 %v970
        %v1010 = vpop.f32.mrf.mxu0
        %v1011 = vadd.f32 0.0, %v1010
        %v1012 = vpop.f32.mrf.mxu0
        %v1013 = vpop.f32.mrf.mxu0
        %v1014 = vpop.f32.mrf.mxu0
        %1015 = vdwg.mxu0
        %1016 = vrot.lane.b32.xlu0 %v836, 64
        %v1017 = vpop.permute.xlu0 %1016
        %v1019 = vsel %vm942, %v966, 0
        %v1022 = vsel %vm972, %v1017, 0
        %1024 = vmatprep.subr.bf16.mxu0 0
        %1025 = vmatpush1.bf16.msra.mxu0 0
        %1026 = vmatprep.subr.bf16.mxu0 0
        %1027 = vmatpush1.bf16.msra.mxu0 0
        %1028 = vmatprep.subr.bf16.mxu0 0
        %1029 = vmatpush1.bf16.msra.mxu0 0
        %1030 = vmatprep.subr.bf16.mxu0 0
        %1031 = vmatpush1.bf16.msra.mxu0 0
        %1032 = vmatprep.subr.bf16.mxu0 0
        %1033 = vmatpush1.bf16.msra.mxu0 0
        %1034 = vmatprep.subr.bf16.mxu0 0
        %1035 = vmatpush1.bf16.msra.mxu0 0
        %1036 = vmatprep.subr.bf16.mxu0 0
        %1037 = vmatpush1.bf16.msra.mxu0 0
        %1038 = vmatprep.subr.bf16.mxu0 0
        %1039 = vmatpush1.bf16.msra.mxu0 %v1022
        %1040 = vmatprep.subr.bf16.mxu0 0
        %1041 = vmatpush2.bf16.msra.mxu0 0
        %1042 = vmatprep.subr.bf16.mxu0 0
        %1043 = vmatpush2.bf16.msra.mxu0 0
        %1044 = vmatprep.subr.bf16.mxu0 0
        %1045 = vmatpush2.bf16.msra.mxu0 0
        %1046 = vmatprep.subr.bf16.mxu0 0
        %1047 = vmatpush2.bf16.msra.mxu0 0
        %1048 = vmatprep.subr.bf16.mxu0 0
        %1049 = vmatpush2.bf16.msra.mxu0 0
        %1050 = vmatprep.subr.bf16.mxu0 0
        %1051 = vmatpush2.bf16.msra.mxu0 0
        %1052 = vmatprep.subr.bf16.mxu0 0
        %1053 = vmatpush2.bf16.msra.mxu0 0
        %1054 = vmatprep.subr.bf16.mxu0 0
        %1055 = vmatpush2.bf16.msra.mxu0 0
        %1056 = vmatprep.mubr.bf16.mxu0 0
        %1057 = vmatmul.mubr.bf16.gmra.mxu0 %v1019
        %v1058 = vpop.f32.mrf.mxu0
        %v1059 = vadd.f32 0.0, %v1058
        %v1060 = vpop.f32.mrf.mxu0
        %v1061 = vpop.f32.mrf.mxu0
        %v1062 = vpop.f32.mrf.mxu0
        %1063 = vdwg.mxu0
        %1065 = vrot.lane.b32.xlu0 %v1059, 16
        %v1066 = vpop.permute.xlu0 %1065
        %v1068 = vsel %vm846, %v1011, %v1066
        %v1069 = vpack.c.bf16 %v1068, %v1068
        %v1070 = vld [vmem:[%s718] sm:$0xf]
        %v1071 = vld [vmem:[%s718 + $0x4] sm:$0xf]
        %v1072 = vld [vmem:[%s718 + $0x8] sm:$0xf]
        %v1073 = vld [vmem:[%s718 + $0xc] sm:$0xf]
        %v1074 = vld [vmem:[%s721] sm:$0x1]
        %v1076 = vlaneseq
        %v1077 = vshrl.u32 %v1076, 7
        %v1078 = vsub.s32 0, %v1077
        %v1079 = vrot.slane %v1074, %v1078
        %v1085 = vunpack.c.l.b16 %v1070
        %v1086 = vunpack.c.l.b16 %v1071
        %v1087 = vunpack.c.l.b16 %v1072
        %v1088 = vunpack.c.l.b16 %v1073
        %v1089 = vpack.c.b16 %v1086, %v1085
        %v1090 = vpack.c.b16 %v1088, %v1087
        %v1094 = vsel %vm783, %v1069, 0
        %1096 = vmatprep.subr.bf16.mxu0 0
        %1097 = vmatpush1.bf16.msra.mxu0 0
        %1098 = vmatprep.subr.bf16.mxu0 0
        %1099 = vmatpush1.bf16.msra.mxu0 0
        %1100 = vmatprep.subr.bf16.mxu0 0
        %1101 = vmatpush1.bf16.msra.mxu0 0
        %1102 = vmatprep.subr.bf16.mxu0 0
        %1103 = vmatpush1.bf16.msra.mxu0 0
        %1104 = vmatprep.subr.bf16.mxu0 0
        %1105 = vmatpush1.bf16.msra.mxu0 0
        %1106 = vmatprep.subr.bf16.mxu0 0
        %1107 = vmatpush1.bf16.msra.mxu0 0
        %1108 = vmatprep.subr.bf16.mxu0 0
        %1109 = vmatpush1.bf16.msra.mxu0 %v1090
        %1110 = vmatprep.subr.bf16.mxu0 0
        %1111 = vmatpush1.bf16.msra.mxu0 %v1089
        %1112 = vmatprep.subr.bf16.mxu0 0
        %1113 = vmatpush2.bf16.msra.mxu0 0
        %1114 = vmatprep.subr.bf16.mxu0 0
        %1115 = vmatpush2.bf16.msra.mxu0 0
        %1116 = vmatprep.subr.bf16.mxu0 0
        %1117 = vmatpush2.bf16.msra.mxu0 0
        %1118 = vmatprep.subr.bf16.mxu0 0
        %1119 = vmatpush2.bf16.msra.mxu0 0
        %1120 = vmatprep.subr.bf16.mxu0 0
        %1121 = vmatpush2.bf16.msra.mxu0 0
        %1122 = vmatprep.subr.bf16.mxu0 0
        %1123 = vmatpush2.bf16.msra.mxu0 0
        %1124 = vmatprep.subr.bf16.mxu0 0
        %1125 = vmatpush2.bf16.msra.mxu0 0
        %1126 = vmatprep.subr.bf16.mxu0 0
        %1127 = vmatpush2.bf16.msra.mxu0 0
        %1128 = vmatprep.mubr.bf16.mxu0 0
        %1129 = vmatmul.mubr.bf16.gmra.mxu0 %v1094
        %v1130 = vpop.f32.mrf.mxu0
        %v1131 = vadd.f32 %v1079, %v1130
        %v1132 = vpop.f32.mrf.mxu0
        %v1133 = vpop.f32.mrf.mxu0
        %v1134 = vpop.f32.mrf.mxu0
        %1135 = vdwg.mxu0
        %v1136 = vadd.f32 %v1131, %v756
        %v1137 = vld [vmem:[%s724] sm:$0x1]
        %v1138 = vld [vmem:[%s727] sm:$0x1]
        %v1139 = vsel %vm783, %v1136, 0.0
        %1140 = vadd.xlane.f32.xlu0 %v1139
        %v1141 = vpop.xlane.xlu0 %1140
        %v1142 = vrcp.pop 32.0
        %v1143 = vmul.f32 %v1141, %v1142
        %v1144 = vsub.f32 %v1136, %v1143
        %v1145 = vmul.f32 %v1144, %v1144
        %v1146 = vsel %vm783, %v1145, 0.0
        %1147 = vadd.xlane.f32.xlu0 %v1146
        %v1148 = vpop.xlane.xlu0 %1147
        %v1149 = vmul.f32 %v1148, %v1142
        %v1150 = vadd.f32 %v1149, 1e-05
        %v1151 = vrsqrt.pop %v1150
        %v1152 = vmul.f32 %v1144, %v1151
        %v1154 = vlaneseq
        %v1155 = vshrl.u32 %v1154, 7
        %v1156 = vsub.s32 0, %v1155
        %v1157 = vrot.slane %v1137, %v1156
        %v1159 = vmul.f32 %v1152, %v1157
        %v1161 = vlaneseq
        %v1162 = vshrl.u32 %v1161, 7
        %v1163 = vsub.s32 0, %v1162
        %v1164 = vrot.slane %v1138, %v1163
        %v1166 = vadd.f32 %v1159, %v1164
        %1168 = vset.pattern.permute.xlu0 0
        %1169 = vperm.xlu0 %1168, %v759
        %v1170 = vpop.permute.xlu0 %1169
        %v1172 = vmul.f32 %v1166, %v1170
        %v1173 = vpack.c.bf16 %v1172, %v1172
        %v1175 = vunpack.c.l.b16 %v1173
        %v1176 = vpack.c.b16 %v1175, %v1175
        %v1177 = vrot.slane %v1176, 6
        %v1178 = vrot.slane %v1177, 4
        %vm1181 = vcmask 257026
        %1182 = vst.msk [vmem:[#allocation2] sm:$0xc] %vm1181, %v1177
        %vm1183 = vcmask 254976
        %1184 = vst.msk [vmem:[#allocation2 + $0x4] sm:$0x3] %vm1183, %v1178
        %v1185 = vld [vmem:[#allocation2] sm:$0xf]
        %v1186 = vld [vmem:[#allocation2 + $0x4] sm:$0xf]
        %v1187 = vld [vmem:[%s598] sm:$0xf]
        %v1188 = vld [vmem:[%s598 + $0x4] sm:$0xf]
        %v1189 = vld [vmem:[%s598 + $0x8] sm:$0xf]
        %v1190 = vld [vmem:[%s598 + $0xc] sm:$0xf]
        %s1191 = scalar_lea.vmem %s598, 16 [#allocation3]
        %v1192 = vld [vmem:[%s1191] sm:$0xf]
        %v1193 = vld [vmem:[%s1191 + $0x4] sm:$0xf]
        %v1194 = vld [vmem:[%s1191 + $0x8] sm:$0xf]
        %v1195 = vld [vmem:[%s1191 + $0xc] sm:$0xf]
        %v1198 = vunpack.c.l.b16 %v1185
        %v1199 = vunpack.c.l.b16 %v1186
        %v1200 = vpack.c.b16 %v1199, %v1198
        %v1202 = vshrl.u32 %v1200, 16
        %v1204 = vshll.u32 %v1200, 16
        %v1206 = vrot.slane %v1204, 1
        %v1207 = vor.u32 %v1202, %v1206
        %v1212 = vunpack.c.l.b16 %v1192
        %v1213 = vunpack.c.l.b16 %v1193
        %v1214 = vunpack.c.l.b16 %v1194
        %v1215 = vunpack.c.l.b16 %v1195
        %v1216 = vpack.c.b16 %v1213, %v1212
        %v1217 = vpack.c.b16 %v1215, %v1214
        %v1221 = vsel %vm783, %v1207, 0
        %1223 = vmatprep.subr.bf16.mxu0 0
        %1224 = vmatpush1.bf16.msra.mxu0 0
        %1225 = vmatprep.subr.bf16.mxu0 0
        %1226 = vmatpush1.bf16.msra.mxu0 0
        %1227 = vmatprep.subr.bf16.mxu0 0
        %1228 = vmatpush1.bf16.msra.mxu0 0
        %1229 = vmatprep.subr.bf16.mxu0 0
        %1230 = vmatpush1.bf16.msra.mxu0 0
        %1231 = vmatprep.subr.bf16.mxu0 0
        %1232 = vmatpush1.bf16.msra.mxu0 0
        %1233 = vmatprep.subr.bf16.mxu0 0
        %1234 = vmatpush1.bf16.msra.mxu0 0
        %1235 = vmatprep.subr.bf16.mxu0 0
        %1236 = vmatpush1.bf16.msra.mxu0 %v1217
        %1237 = vmatprep.subr.bf16.mxu0 0
        %1238 = vmatpush1.bf16.msra.mxu0 %v1216
        %1239 = vmatprep.subr.bf16.mxu0 0
        %1240 = vmatpush2.bf16.msra.mxu0 0
        %1241 = vmatprep.subr.bf16.mxu0 0
        %1242 = vmatpush2.bf16.msra.mxu0 0
        %1243 = vmatprep.subr.bf16.mxu0 0
        %1244 = vmatpush2.bf16.msra.mxu0 0
        %1245 = vmatprep.subr.bf16.mxu0 0
        %1246 = vmatpush2.bf16.msra.mxu0 0
        %1247 = vmatprep.subr.bf16.mxu0 0
        %1248 = vmatpush2.bf16.msra.mxu0 0
        %1249 = vmatprep.subr.bf16.mxu0 0
        %1250 = vmatpush2.bf16.msra.mxu0 0
        %1251 = vmatprep.subr.bf16.mxu0 0
        %1252 = vmatpush2.bf16.msra.mxu0 0
        %1253 = vmatprep.subr.bf16.mxu0 0
        %1254 = vmatpush2.bf16.msra.mxu0 0
        %1255 = vmatprep.mubr.bf16.mxu0 0
        %1256 = vmatmul.mubr.bf16.gmra.mxu0 %v1221
        %v1257 = vpop.f32.mrf.mxu0
        %v1258 = vadd.f32 0.0, %v1257
        %v1259 = vpop.f32.mrf.mxu0
        %v1260 = vpop.f32.mrf.mxu0
        %v1261 = vpop.f32.mrf.mxu0
        %1262 = vdwg.mxu0
        %v1267 = vunpack.c.l.b16 %v1187
        %v1268 = vunpack.c.l.b16 %v1188
        %v1269 = vunpack.c.l.b16 %v1189
        %v1270 = vunpack.c.l.b16 %v1190
        %v1271 = vpack.c.b16 %v1268, %v1267
        %v1272 = vpack.c.b16 %v1270, %v1269
        %v1276 = vsel %vm783, %v1185, 0
        %1278 = vmatprep.subr.bf16.mxu0 0
        %1279 = vmatpush1.bf16.msra.mxu0 0
        %1280 = vmatprep.subr.bf16.mxu0 0
        %1281 = vmatpush1.bf16.msra.mxu0 0
        %1282 = vmatprep.subr.bf16.mxu0 0
        %1283 = vmatpush1.bf16.msra.mxu0 0
        %1284 = vmatprep.subr.bf16.mxu0 0
        %1285 = vmatpush1.bf16.msra.mxu0 0
        %1286 = vmatprep.subr.bf16.mxu0 0
        %1287 = vmatpush1.bf16.msra.mxu0 0
        %1288 = vmatprep.subr.bf16.mxu0 0
        %1289 = vmatpush1.bf16.msra.mxu0 0
        %1290 = vmatprep.subr.bf16.mxu0 0
        %1291 = vmatpush1.bf16.msra.mxu0 %v1272
        %1292 = vmatprep.subr.bf16.mxu0 0
        %1293 = vmatpush1.bf16.msra.mxu0 %v1271
        %1294 = vmatprep.subr.bf16.mxu0 0
        %1295 = vmatpush2.bf16.msra.mxu0 0
        %1296 = vmatprep.subr.bf16.mxu0 0
        %1297 = vmatpush2.bf16.msra.mxu0 0
        %1298 = vmatprep.subr.bf16.mxu0 0
        %1299 = vmatpush2.bf16.msra.mxu0 0
        %1300 = vmatprep.subr.bf16.mxu0 0
        %1301 = vmatpush2.bf16.msra.mxu0 0
        %1302 = vmatprep.subr.bf16.mxu0 0
        %1303 = vmatpush2.bf16.msra.mxu0 0
        %1304 = vmatprep.subr.bf16.mxu0 0
        %1305 = vmatpush2.bf16.msra.mxu0 0
        %1306 = vmatprep.subr.bf16.mxu0 0
        %1307 = vmatpush2.bf16.msra.mxu0 0
        %1308 = vmatprep.subr.bf16.mxu0 0
        %1309 = vmatpush2.bf16.msra.mxu0 0
        %1310 = vmatprep.mubr.bf16.mxu0 0
        %1311 = vmatmul.mubr.bf16.gmra.mxu0 %v1276
        %v1312 = vpop.f32.mrf.mxu0
        %v1313 = vadd.f32 %v1258, %v1312
        %v1314 = vpop.f32.mrf.mxu0
        %v1315 = vpop.f32.mrf.mxu0
        %v1316 = vpop.f32.mrf.mxu0
        %1317 = vdwg.mxu0
        %s1318 = scalar_lea.vmem %s598, 32 [#allocation3]
        %v1319 = vld [vmem:[%s1318] sm:$0xf]
        %v1320 = vld [vmem:[%s1318 + $0x4] sm:$0xf]
        %v1321 = vld [vmem:[%s1318 + $0x8] sm:$0xf]
        %v1322 = vld [vmem:[%s1318 + $0xc] sm:$0xf]
        %v1323 = vrot.slane %v1200, 1
        %v1328 = vunpack.c.l.b16 %v1319
        %v1329 = vunpack.c.l.b16 %v1320
        %v1330 = vunpack.c.l.b16 %v1321
        %v1331 = vunpack.c.l.b16 %v1322
        %v1332 = vpack.c.b16 %v1329, %v1328
        %v1333 = vpack.c.b16 %v1331, %v1330
        %v1337 = vsel %vm783, %v1323, 0
        %1339 = vmatprep.subr.bf16.mxu0 0
        %1340 = vmatpush1.bf16.msra.mxu0 0
        %1341 = vmatprep.subr.bf16.mxu0 0
        %1342 = vmatpush1.bf16.msra.mxu0 0
        %1343 = vmatprep.subr.bf16.mxu0 0
        %1344 = vmatpush1.bf16.msra.mxu0 0
        %1345 = vmatprep.subr.bf16.mxu0 0
        %1346 = vmatpush1.bf16.msra.mxu0 0
        %1347 = vmatprep.subr.bf16.mxu0 0
        %1348 = vmatpush1.bf16.msra.mxu0 0
        %1349 = vmatprep.subr.bf16.mxu0 0
        %1350 = vmatpush1.bf16.msra.mxu0 0
        %1351 = vmatprep.subr.bf16.mxu0 0
        %1352 = vmatpush1.bf16.msra.mxu0 %v1333
        %1353 = vmatprep.subr.bf16.mxu0 0
        %1354 = vmatpush1.bf16.msra.mxu0 %v1332
        %1355 = vmatprep.subr.bf16.mxu0 0
        %1356 = vmatpush2.bf16.msra.mxu0 0
        %1357 = vmatprep.subr.bf16.mxu0 0
        %1358 = vmatpush2.bf16.msra.mxu0 0
        %1359 = vmatprep.subr.bf16.mxu0 0
        %1360 = vmatpush2.bf16.msra.mxu0 0
        %1361 = vmatprep.subr.bf16.mxu0 0
        %1362 = vmatpush2.bf16.msra.mxu0 0
        %1363 = vmatprep.subr.bf16.mxu0 0
        %1364 = vmatpush2.bf16.msra.mxu0 0
        %1365 = vmatprep.subr.bf16.mxu0 0
        %1366 = vmatpush2.bf16.msra.mxu0 0
        %1367 = vmatprep.subr.bf16.mxu0 0
        %1368 = vmatpush2.bf16.msra.mxu0 0
        %1369 = vmatprep.subr.bf16.mxu0 0
        %1370 = vmatpush2.bf16.msra.mxu0 0
        %1371 = vmatprep.mubr.bf16.mxu0 0
        %1372 = vmatmul.mubr.bf16.gmra.mxu0 %v1337
        %v1373 = vpop.f32.mrf.mxu0
        %v1374 = vadd.f32 0.0, %v1373
        %v1375 = vpop.f32.mrf.mxu0
        %v1376 = vpop.f32.mrf.mxu0
        %v1377 = vpop.f32.mrf.mxu0
        %1378 = vdwg.mxu0
        %v1379 = vadd.f32 %v1313, %v1374
        %s1380 = scalar_lea.vmem %s598, 48 [#allocation3]
        %v1381 = vld [vmem:[%s1380] sm:$0xf]
        %v1382 = vld [vmem:[%s1380 + $0x4] sm:$0xf]
        %v1383 = vld [vmem:[%s1380 + $0x8] sm:$0xf]
        %v1384 = vld [vmem:[%s1380 + $0xc] sm:$0xf]
        %v1385 = vrot.slane %v1202, 1
        %v1386 = vrot.slane %v1204, 2
        %v1387 = vor.u32 %v1385, %v1386
        %v1392 = vunpack.c.l.b16 %v1381
        %v1393 = vunpack.c.l.b16 %v1382
        %v1394 = vunpack.c.l.b16 %v1383
        %v1395 = vunpack.c.l.b16 %v1384
        %v1396 = vpack.c.b16 %v1393, %v1392
        %v1397 = vpack.c.b16 %v1395, %v1394
        %v1401 = vsel %vm783, %v1387, 0
        %1403 = vmatprep.subr.bf16.mxu0 0
        %1404 = vmatpush1.bf16.msra.mxu0 0
        %1405 = vmatprep.subr.bf16.mxu0 0
        %1406 = vmatpush1.bf16.msra.mxu0 0
        %1407 = vmatprep.subr.bf16.mxu0 0
        %1408 = vmatpush1.bf16.msra.mxu0 0
        %1409 = vmatprep.subr.bf16.mxu0 0
        %1410 = vmatpush1.bf16.msra.mxu0 0
        %1411 = vmatprep.subr.bf16.mxu0 0
        %1412 = vmatpush1.bf16.msra.mxu0 0
        %1413 = vmatprep.subr.bf16.mxu0 0
        %1414 = vmatpush1.bf16.msra.mxu0 0
        %1415 = vmatprep.subr.bf16.mxu0 0
        %1416 = vmatpush1.bf16.msra.mxu0 %v1397
        %1417 = vmatprep.subr.bf16.mxu0 0
        %1418 = vmatpush1.bf16.msra.mxu0 %v1396
        %1419 = vmatprep.subr.bf16.mxu0 0
        %1420 = vmatpush2.bf16.msra.mxu0 0
        %1421 = vmatprep.subr.bf16.mxu0 0
        %1422 = vmatpush2.bf16.msra.mxu0 0
        %1423 = vmatprep.subr.bf16.mxu0 0
        %1424 = vmatpush2.bf16.msra.mxu0 0
        %1425 = vmatprep.subr.bf16.mxu0 0
        %1426 = vmatpush2.bf16.msra.mxu0 0
        %1427 = vmatprep.subr.bf16.mxu0 0
        %1428 = vmatpush2.bf16.msra.mxu0 0
        %1429 = vmatprep.subr.bf16.mxu0 0
        %1430 = vmatpush2.bf16.msra.mxu0 0
        %1431 = vmatprep.subr.bf16.mxu0 0
        %1432 = vmatpush2.bf16.msra.mxu0 0
        %1433 = vmatprep.subr.bf16.mxu0 0
        %1434 = vmatpush2.bf16.msra.mxu0 0
        %1435 = vmatprep.mubr.bf16.mxu0 0
        %1436 = vmatmul.mubr.bf16.gmra.mxu0 %v1401
        %v1437 = vpop.f32.mrf.mxu0
        %v1438 = vadd.f32 0.0, %v1437
        %v1439 = vpop.f32.mrf.mxu0
        %v1440 = vpop.f32.mrf.mxu0
        %v1441 = vpop.f32.mrf.mxu0
        %1442 = vdwg.mxu0
        %v1443 = vadd.f32 %v1379, %v1438
        %s1444 = scalar_lea.vmem %s598, 64 [#allocation3]
        %v1445 = vld [vmem:[%s1444] sm:$0xf]
        %v1446 = vld [vmem:[%s1444 + $0x4] sm:$0xf]
        %v1447 = vld [vmem:[%s1444 + $0x8] sm:$0xf]
        %v1448 = vld [vmem:[%s1444 + $0xc] sm:$0xf]
        %v1449 = vrot.slane %v1200, 2
        %v1454 = vunpack.c.l.b16 %v1445
        %v1455 = vunpack.c.l.b16 %v1446
        %v1456 = vunpack.c.l.b16 %v1447
        %v1457 = vunpack.c.l.b16 %v1448
        %v1458 = vpack.c.b16 %v1455, %v1454
        %v1459 = vpack.c.b16 %v1457, %v1456
        %v1463 = vsel %vm783, %v1449, 0
        %1465 = vmatprep.subr.bf16.mxu0 0
        %1466 = vmatpush1.bf16.msra.mxu0 0
        %1467 = vmatprep.subr.bf16.mxu0 0
        %1468 = vmatpush1.bf16.msra.mxu0 0
        %1469 = vmatprep.subr.bf16.mxu0 0
        %1470 = vmatpush1.bf16.msra.mxu0 0
        %1471 = vmatprep.subr.bf16.mxu0 0
        %1472 = vmatpush1.bf16.msra.mxu0 0
        %1473 = vmatprep.subr.bf16.mxu0 0
        %1474 = vmatpush1.bf16.msra.mxu0 0
        %1475 = vmatprep.subr.bf16.mxu0 0
        %1476 = vmatpush1.bf16.msra.mxu0 0
        %1477 = vmatprep.subr.bf16.mxu0 0
        %1478 = vmatpush1.bf16.msra.mxu0 %v1459
        %1479 = vmatprep.subr.bf16.mxu0 0
        %1480 = vmatpush1.bf16.msra.mxu0 %v1458
        %1481 = vmatprep.subr.bf16.mxu0 0
        %1482 = vmatpush2.bf16.msra.mxu0 0
        %1483 = vmatprep.subr.bf16.mxu0 0
        %1484 = vmatpush2.bf16.msra.mxu0 0
        %1485 = vmatprep.subr.bf16.mxu0 0
        %1486 = vmatpush2.bf16.msra.mxu0 0
        %1487 = vmatprep.subr.bf16.mxu0 0
        %1488 = vmatpush2.bf16.msra.mxu0 0
        %1489 = vmatprep.subr.bf16.mxu0 0
        %1490 = vmatpush2.bf16.msra.mxu0 0
        %1491 = vmatprep.subr.bf16.mxu0 0
        %1492 = vmatpush2.bf16.msra.mxu0 0
        %1493 = vmatprep.subr.bf16.mxu0 0
        %1494 = vmatpush2.bf16.msra.mxu0 0
        %1495 = vmatprep.subr.bf16.mxu0 0
        %1496 = vmatpush2.bf16.msra.mxu0 0
        %1497 = vmatprep.mubr.bf16.mxu0 0
        %1498 = vmatmul.mubr.bf16.gmra.mxu0 %v1463
        %v1499 = vpop.f32.mrf.mxu0
        %v1500 = vadd.f32 0.0, %v1499
        %v1501 = vpop.f32.mrf.mxu0
        %v1502 = vpop.f32.mrf.mxu0
        %v1503 = vpop.f32.mrf.mxu0
        %1504 = vdwg.mxu0
        %v1505 = vadd.f32 %v1443, %v1500
        %s1506 = scalar_lea.vmem %s598, 80 [#allocation3]
        %v1507 = vld [vmem:[%s1506] sm:$0xf]
        %v1508 = vld [vmem:[%s1506 + $0x4] sm:$0xf]
        %v1509 = vld [vmem:[%s1506 + $0x8] sm:$0xf]
        %v1510 = vld [vmem:[%s1506 + $0xc] sm:$0xf]
        %v1511 = vrot.slane %v1202, 2
        %v1512 = vrot.slane %v1204, 3
        %v1513 = vor.u32 %v1511, %v1512
        %v1518 = vunpack.c.l.b16 %v1507
        %v1519 = vunpack.c.l.b16 %v1508
        %v1520 = vunpack.c.l.b16 %v1509
        %v1521 = vunpack.c.l.b16 %v1510
        %v1522 = vpack.c.b16 %v1519, %v1518
        %v1523 = vpack.c.b16 %v1521, %v1520
        %v1527 = vsel %vm783, %v1513, 0
        %1529 = vmatprep.subr.bf16.mxu0 0
        %1530 = vmatpush1.bf16.msra.mxu0 0
        %1531 = vmatprep.subr.bf16.mxu0 0
        %1532 = vmatpush1.bf16.msra.mxu0 0
        %1533 = vmatprep.subr.bf16.mxu0 0
        %1534 = vmatpush1.bf16.msra.mxu0 0
        %1535 = vmatprep.subr.bf16.mxu0 0
        %1536 = vmatpush1.bf16.msra.mxu0 0
        %1537 = vmatprep.subr.bf16.mxu0 0
        %1538 = vmatpush1.bf16.msra.mxu0 0
        %1539 = vmatprep.subr.bf16.mxu0 0
        %1540 = vmatpush1.bf16.msra.mxu0 0
        %1541 = vmatprep.subr.bf16.mxu0 0
        %1542 = vmatpush1.bf16.msra.mxu0 %v1523
        %1543 = vmatprep.subr.bf16.mxu0 0
        %1544 = vmatpush1.bf16.msra.mxu0 %v1522
        %1545 = vmatprep.subr.bf16.mxu0 0
        %1546 = vmatpush2.bf16.msra.mxu0 0
        %1547 = vmatprep.subr.bf16.mxu0 0
        %1548 = vmatpush2.bf16.msra.mxu0 0
        %1549 = vmatprep.subr.bf16.mxu0 0
        %1550 = vmatpush2.bf16.msra.mxu0 0
        %1551 = vmatprep.subr.bf16.mxu0 0
        %1552 = vmatpush2.bf16.msra.mxu0 0
        %1553 = vmatprep.subr.bf16.mxu0 0
        %1554 = vmatpush2.bf16.msra.mxu0 0
        %1555 = vmatprep.subr.bf16.mxu0 0
        %1556 = vmatpush2.bf16.msra.mxu0 0
        %1557 = vmatprep.subr.bf16.mxu0 0
        %1558 = vmatpush2.bf16.msra.mxu0 0
        %1559 = vmatprep.subr.bf16.mxu0 0
        %1560 = vmatpush2.bf16.msra.mxu0 0
        %1561 = vmatprep.mubr.bf16.mxu0 0
        %1562 = vmatmul.mubr.bf16.gmra.mxu0 %v1527
        %v1563 = vpop.f32.mrf.mxu0
        %v1564 = vadd.f32 0.0, %v1563
        %v1565 = vpop.f32.mrf.mxu0
        %v1566 = vpop.f32.mrf.mxu0
        %v1567 = vpop.f32.mrf.mxu0
        %1568 = vdwg.mxu0
        %v1569 = vadd.f32 %v1505, %v1564
        %s1570 = scalar_lea.vmem %s598, 96 [#allocation3]
        %v1571 = vld [vmem:[%s1570] sm:$0xf]
        %v1572 = vld [vmem:[%s1570 + $0x4] sm:$0xf]
        %v1573 = vld [vmem:[%s1570 + $0x8] sm:$0xf]
        %v1574 = vld [vmem:[%s1570 + $0xc] sm:$0xf]
        %v1575 = vrot.slane %v1200, 3
        %v1580 = vunpack.c.l.b16 %v1571
        %v1581 = vunpack.c.l.b16 %v1572
        %v1582 = vunpack.c.l.b16 %v1573
        %v1583 = vunpack.c.l.b16 %v1574
        %v1584 = vpack.c.b16 %v1581, %v1580
        %v1585 = vpack.c.b16 %v1583, %v1582
        %v1589 = vsel %vm783, %v1575, 0
        %1591 = vmatprep.subr.bf16.mxu0 0
        %1592 = vmatpush1.bf16.msra.mxu0 0
        %1593 = vmatprep.subr.bf16.mxu0 0
        %1594 = vmatpush1.bf16.msra.mxu0 0
        %1595 = vmatprep.subr.bf16.mxu0 0
        %1596 = vmatpush1.bf16.msra.mxu0 0
        %1597 = vmatprep.subr.bf16.mxu0 0
        %1598 = vmatpush1.bf16.msra.mxu0 0
        %1599 = vmatprep.subr.bf16.mxu0 0
        %1600 = vmatpush1.bf16.msra.mxu0 0
        %1601 = vmatprep.subr.bf16.mxu0 0
        %1602 = vmatpush1.bf16.msra.mxu0 0
        %1603 = vmatprep.subr.bf16.mxu0 0
        %1604 = vmatpush1.bf16.msra.mxu0 %v1585
        %1605 = vmatprep.subr.bf16.mxu0 0
        %1606 = vmatpush1.bf16.msra.mxu0 %v1584
        %1607 = vmatprep.subr.bf16.mxu0 0
        %1608 = vmatpush2.bf16.msra.mxu0 0
        %1609 = vmatprep.subr.bf16.mxu0 0
        %1610 = vmatpush2.bf16.msra.mxu0 0
        %1611 = vmatprep.subr.bf16.mxu0 0
        %1612 = vmatpush2.bf16.msra.mxu0 0
        %1613 = vmatprep.subr.bf16.mxu0 0
        %1614 = vmatpush2.bf16.msra.mxu0 0
        %1615 = vmatprep.subr.bf16.mxu0 0
        %1616 = vmatpush2.bf16.msra.mxu0 0
        %1617 = vmatprep.subr.bf16.mxu0 0
        %1618 = vmatpush2.bf16.msra.mxu0 0
        %1619 = vmatprep.subr.bf16.mxu0 0
        %1620 = vmatpush2.bf16.msra.mxu0 0
        %1621 = vmatprep.subr.bf16.mxu0 0
        %1622 = vmatpush2.bf16.msra.mxu0 0
        %1623 = vmatprep.mubr.bf16.mxu0 0
        %1624 = vmatmul.mubr.bf16.gmra.mxu0 %v1589
        %v1625 = vpop.f32.mrf.mxu0
        %v1626 = vadd.f32 0.0, %v1625
        %v1627 = vpop.f32.mrf.mxu0
        %v1628 = vpop.f32.mrf.mxu0
        %v1629 = vpop.f32.mrf.mxu0
        %1630 = vdwg.mxu0
        %v1631 = vadd.f32 %v1569, %v1626
        %s1632 = scalar_lea.vmem %s598, 112 [#allocation3]
        %v1633 = vld [vmem:[%s1632] sm:$0xf]
        %v1634 = vld [vmem:[%s1632 + $0x4] sm:$0xf]
        %v1635 = vld [vmem:[%s1632 + $0x8] sm:$0xf]
        %v1636 = vld [vmem:[%s1632 + $0xc] sm:$0xf]
        %v1637 = vrot.slane %v1202, 3
        %v1638 = vrot.slane %v1204, 4
        %v1639 = vor.u32 %v1637, %v1638
        %v1644 = vunpack.c.l.b16 %v1633
        %v1645 = vunpack.c.l.b16 %v1634
        %v1646 = vunpack.c.l.b16 %v1635
        %v1647 = vunpack.c.l.b16 %v1636
        %v1648 = vpack.c.b16 %v1645, %v1644
        %v1649 = vpack.c.b16 %v1647, %v1646
        %v1653 = vsel %vm783, %v1639, 0
        %1655 = vmatprep.subr.bf16.mxu0 0
        %1656 = vmatpush1.bf16.msra.mxu0 0
        %1657 = vmatprep.subr.bf16.mxu0 0
        %1658 = vmatpush1.bf16.msra.mxu0 0
        %1659 = vmatprep.subr.bf16.mxu0 0
        %1660 = vmatpush1.bf16.msra.mxu0 0
        %1661 = vmatprep.subr.bf16.mxu0 0
        %1662 = vmatpush1.bf16.msra.mxu0 0
        %1663 = vmatprep.subr.bf16.mxu0 0
        %1664 = vmatpush1.bf16.msra.mxu0 0
        %1665 = vmatprep.subr.bf16.mxu0 0
        %1666 = vmatpush1.bf16.msra.mxu0 0
        %1667 = vmatprep.subr.bf16.mxu0 0
        %1668 = vmatpush1.bf16.msra.mxu0 %v1649
        %1669 = vmatprep.subr.bf16.mxu0 0
        %1670 = vmatpush1.bf16.msra.mxu0 %v1648
        %1671 = vmatprep.subr.bf16.mxu0 0
        %1672 = vmatpush2.bf16.msra.mxu0 0
        %1673 = vmatprep.subr.bf16.mxu0 0
        %1674 = vmatpush2.bf16.msra.mxu0 0
        %1675 = vmatprep.subr.bf16.mxu0 0
        %1676 = vmatpush2.bf16.msra.mxu0 0
        %1677 = vmatprep.subr.bf16.mxu0 0
        %1678 = vmatpush2.bf16.msra.mxu0 0
        %1679 = vmatprep.subr.bf16.mxu0 0
        %1680 = vmatpush2.bf16.msra.mxu0 0
        %1681 = vmatprep.subr.bf16.mxu0 0
        %1682 = vmatpush2.bf16.msra.mxu0 0
        %1683 = vmatprep.subr.bf16.mxu0 0
        %1684 = vmatpush2.bf16.msra.mxu0 0
        %1685 = vmatprep.subr.bf16.mxu0 0
        %1686 = vmatpush2.bf16.msra.mxu0 0
        %1687 = vmatprep.mubr.bf16.mxu0 0
        %1688 = vmatmul.mubr.bf16.gmra.mxu0 %v1653
        %v1689 = vpop.f32.mrf.mxu0
        %v1690 = vadd.f32 0.0, %v1689
        %v1691 = vpop.f32.mrf.mxu0
        %v1692 = vpop.f32.mrf.mxu0
        %v1693 = vpop.f32.mrf.mxu0
        %1694 = vdwg.mxu0
        %v1695 = vadd.f32 %v1631, %v1690
        %s1696 = scalar_lea.vmem %s598, 128 [#allocation3]
        %v1697 = vld [vmem:[%s1696] sm:$0xf]
        %v1698 = vld [vmem:[%s1696 + $0x4] sm:$0xf]
        %v1699 = vld [vmem:[%s1696 + $0x8] sm:$0xf]
        %v1700 = vld [vmem:[%s1696 + $0xc] sm:$0xf]
        %v1705 = vunpack.c.l.b16 %v1697
        %v1706 = vunpack.c.l.b16 %v1698
        %v1707 = vunpack.c.l.b16 %v1699
        %v1708 = vunpack.c.l.b16 %v1700
        %v1709 = vpack.c.b16 %v1706, %v1705
        %v1710 = vpack.c.b16 %v1708, %v1707
        %v1714 = vsel %vm783, %v1186, 0
        %1716 = vmatprep.subr.bf16.mxu0 0
        %1717 = vmatpush1.bf16.msra.mxu0 0
        %1718 = vmatprep.subr.bf16.mxu0 0
        %1719 = vmatpush1.bf16.msra.mxu0 0
        %1720 = vmatprep.subr.bf16.mxu0 0
        %1721 = vmatpush1.bf16.msra.mxu0 0
        %1722 = vmatprep.subr.bf16.mxu0 0
        %1723 = vmatpush1.bf16.msra.mxu0 0
        %1724 = vmatprep.subr.bf16.mxu0 0
        %1725 = vmatpush1.bf16.msra.mxu0 0
        %1726 = vmatprep.subr.bf16.mxu0 0
        %1727 = vmatpush1.bf16.msra.mxu0 0
        %1728 = vmatprep.subr.bf16.mxu0 0
        %1729 = vmatpush1.bf16.msra.mxu0 %v1710
        %1730 = vmatprep.subr.bf16.mxu0 0
        %1731 = vmatpush1.bf16.msra.mxu0 %v1709
        %1732 = vmatprep.subr.bf16.mxu0 0
        %1733 = vmatpush2.bf16.msra.mxu0 0
        %1734 = vmatprep.subr.bf16.mxu0 0
        %1735 = vmatpush2.bf16.msra.mxu0 0
        %1736 = vmatprep.subr.bf16.mxu0 0
        %1737 = vmatpush2.bf16.msra.mxu0 0
        %1738 = vmatprep.subr.bf16.mxu0 0
        %1739 = vmatpush2.bf16.msra.mxu0 0
        %1740 = vmatprep.subr.bf16.mxu0 0
        %1741 = vmatpush2.bf16.msra.mxu0 0
        %1742 = vmatprep.subr.bf16.mxu0 0
        %1743 = vmatpush2.bf16.msra.mxu0 0
        %1744 = vmatprep.subr.bf16.mxu0 0
        %1745 = vmatpush2.bf16.msra.mxu0 0
        %1746 = vmatprep.subr.bf16.mxu0 0
        %1747 = vmatpush2.bf16.msra.mxu0 0
        %1748 = vmatprep.mubr.bf16.mxu0 0
        %1749 = vmatmul.mubr.bf16.gmra.mxu0 %v1714
        %v1750 = vpop.f32.mrf.mxu0
        %v1751 = vadd.f32 0.0, %v1750
        %v1752 = vpop.f32.mrf.mxu0
        %v1753 = vpop.f32.mrf.mxu0
        %v1754 = vpop.f32.mrf.mxu0
        %1755 = vdwg.mxu0
        %v1756 = vadd.f32 %v1695, %v1751
        %v1757 = vld [vmem:[%s730] sm:$0x1]
        %v1759 = vlaneseq
        %v1760 = vshrl.u32 %v1759, 7
        %v1761 = vsub.s32 0, %v1760
        %v1762 = vrot.slane %v1757, %v1761
        %v1764 = vadd.f32 %v1756, %v1762
        %v1765 = vmax.f32 %v1764, 0.0
        %v1766 = vpack.c.bf16 %v1765, %v1765
        %v1767 = vld [vmem:[%s735] sm:$0xf]
        %v1768 = vld [vmem:[%s735 + $0x4] sm:$0xf]
        %v1769 = vld [vmem:[%s735 + $0x8] sm:$0xf]
        %v1770 = vld [vmem:[%s735 + $0xc] sm:$0xf]
        %v1771 = vld [vmem:[%s735 + $0x10] sm:$0xf]
        %v1772 = vld [vmem:[%s735 + $0x14] sm:$0xf]
        %v1773 = vld [vmem:[%s735 + $0x18] sm:$0xf]
        %v1774 = vld [vmem:[%s735 + $0x1c] sm:$0xf]
        %v1775 = vld [vmem:[%s738] sm:$0x1]
        %v1777 = vlaneseq
        %v1778 = vshrl.u32 %v1777, 7
        %v1779 = vsub.s32 0, %v1778
        %v1780 = vrot.slane %v1775, %v1779
        %v1790 = vunpack.c.l.b16 %v1767
        %v1791 = vunpack.c.l.b16 %v1768
        %v1792 = vunpack.c.l.b16 %v1769
        %v1793 = vunpack.c.l.b16 %v1770
        %v1794 = vunpack.c.l.b16 %v1771
        %v1795 = vunpack.c.l.b16 %v1772
        %v1796 = vunpack.c.l.b16 %v1773
        %v1797 = vunpack.c.l.b16 %v1774
        %v1798 = vpack.c.b16 %v1791, %v1790
        %v1799 = vpack.c.b16 %v1793, %v1792
        %v1800 = vpack.c.b16 %v1795, %v1794
        %v1801 = vpack.c.b16 %v1797, %v1796
        %vm1806 = vcmask 523264
        %v1808 = vsel %vm1806, %v1766, 0
        %1810 = vmatprep.subr.bf16.mxu0 0
        %1811 = vmatpush1.bf16.msra.mxu0 0
        %1812 = vmatprep.subr.bf16.mxu0 0
        %1813 = vmatpush1.bf16.msra.mxu0 0
        %1814 = vmatprep.subr.bf16.mxu0 0
        %1815 = vmatpush1.bf16.msra.mxu0 0
        %1816 = vmatprep.subr.bf16.mxu0 0
        %1817 = vmatpush1.bf16.msra.mxu0 0
        %1818 = vmatprep.subr.bf16.mxu0 0
        %1819 = vmatpush1.bf16.msra.mxu0 %v1801
        %1820 = vmatprep.subr.bf16.mxu0 0
        %1821 = vmatpush1.bf16.msra.mxu0 %v1800
        %1822 = vmatprep.subr.bf16.mxu0 0
        %1823 = vmatpush1.bf16.msra.mxu0 %v1799
        %1824 = vmatprep.subr.bf16.mxu0 0
        %1825 = vmatpush1.bf16.msra.mxu0 %v1798
        %1826 = vmatprep.subr.bf16.mxu0 0
        %1827 = vmatpush2.bf16.msra.mxu0 0
        %1828 = vmatprep.subr.bf16.mxu0 0
        %1829 = vmatpush2.bf16.msra.mxu0 0
        %1830 = vmatprep.subr.bf16.mxu0 0
        %1831 = vmatpush2.bf16.msra.mxu0 0
        %1832 = vmatprep.subr.bf16.mxu0 0
        %1833 = vmatpush2.bf16.msra.mxu0 0
        %1834 = vmatprep.subr.bf16.mxu0 0
        %1835 = vmatpush2.bf16.msra.mxu0 0
        %1836 = vmatprep.subr.bf16.mxu0 0
        %1837 = vmatpush2.bf16.msra.mxu0 0
        %1838 = vmatprep.subr.bf16.mxu0 0
        %1839 = vmatpush2.bf16.msra.mxu0 0
        %1840 = vmatprep.subr.bf16.mxu0 0
        %1841 = vmatpush2.bf16.msra.mxu0 0
        %1842 = vmatprep.mubr.bf16.mxu0 0
        %1843 = vmatmul.mubr.bf16.gmra.mxu0 %v1808
        %v1844 = vpop.f32.mrf.mxu0
        %v1845 = vadd.f32 %v1780, %v1844
        %v1846 = vpop.f32.mrf.mxu0
        %v1847 = vpop.f32.mrf.mxu0
        %v1848 = vpop.f32.mrf.mxu0
        %1849 = vdwg.mxu0
        %v1850 = vadd.f32 %v1845, %v1172
        %v1851 = vld [vmem:[%s741] sm:$0x1]
        %v1852 = vld [vmem:[%s744] sm:$0x1]
        %v1853 = vsel %vm783, %v1850, 0.0
        %1854 = vadd.xlane.f32.xlu0 %v1853
        %v1855 = vpop.xlane.xlu0 %1854
        %v1856 = vmul.f32 %v1855, %v1142
        %v1857 = vsub.f32 %v1850, %v1856
        %v1858 = vmul.f32 %v1857, %v1857
        %v1859 = vsel %vm783, %v1858, 0.0
        %1860 = vadd.xlane.f32.xlu0 %v1859
        %v1861 = vpop.xlane.xlu0 %1860
        %v1862 = vmul.f32 %v1861, %v1142
        %v1863 = vadd.f32 %v1862, 1e-05
        %v1864 = vrsqrt.pop %v1863
        %v1865 = vmul.f32 %v1857, %v1864
        %v1867 = vlaneseq
        %v1868 = vshrl.u32 %v1867, 7
        %v1869 = vsub.s32 0, %v1868
        %v1870 = vrot.slane %v1851, %v1869
        %v1872 = vmul.f32 %v1865, %v1870
        %v1874 = vlaneseq
        %v1875 = vshrl.u32 %v1874, 7
        %v1876 = vsub.s32 0, %v1875
        %v1877 = vrot.slane %v1852, %v1876
        %v1879 = vadd.f32 %v1872, %v1877
        %v1880 = vmul.f32 %v1879, %v1170
        %1881 = vst.msk [vmem:[%s694] sm:$0xff] %vm783, %v1880
        %s1882 = sand.u32 %s442, 1
        %s1883 = scalar_lea.sflag [#allocation5], %s1882
        %s1884 = sand.u32 %s442, 1
        %s1885 = smul.addr %s1884, 8
        %s1886 = scalar_lea.vmem [#allocation6], %s1885
        // Predicated region
        $region89: #{tpu_custom_call.1} parent=79 // pred_check
          %p1887 = pneg %p452
        $region90: #{tpu_custom_call.1} parent=79 // pred_check_branch
          %1889 = sbr.rel (%p1887) target = $region92
        $region91: #{tpu_custom_call.1} parent=79 // pred_region
          %s1891 = ssub.s32 128, 128
          %1892 = vsyncadd %s1883, %s1891
          %s1893 = smul.addr %s36, 128
          %s1894 = scalar_lea.hbm %s15, %s1893
          %s1896 = sshll.u32 %s1886, 4
          %s1897 = int_to_ptr.vmem [resolvable:$true] %s1896
          %1899 = dma.vmem_to_hbm [thread:$0]  %s1897, 128, %s1894, %s1883
        $region92: #{tpu_custom_call.1} parent=79 // pred_fallthru
          _
      $region80: #{tpu_custom_call.1} parent=5 // pred_fallthru
        _
      %p1900 = scmp.le.s32.totalorder 2, %s27
      // Predicated region
      $region93: #{tpu_custom_call.1} parent=5 // pred_check
        %p1901 = pneg %p1900
      $region94: #{tpu_custom_call.1} parent=5 // pred_check_branch
        %1903 = sbr.rel (%p1901) target = $region96
      $region95: #{tpu_custom_call.1} parent=5 // pred_region
        %s1904 = ssub.s32 %s27, 2
        // Predicated region
        $region97: #{tpu_custom_call.1} parent=95 // pred_check
          %p1905 = pneg %p458
        $region98: #{tpu_custom_call.1} parent=95 // pred_check_branch
          %1907 = sbr.rel (%p1905) target = $region100
        $region99: #{tpu_custom_call.1} parent=95 // pred_region
          %s1908 = sand.u32 %s443, 1
          %s1909 = scalar_lea.sflag [#allocation5], %s1908
          %s1910 = sand.u32 %s443, 1
          %s1911 = smul.addr %s1910, 8
          %s1912 = scalar_lea.vmem [#allocation6], %s1911
          %1913 = dma.done %s1909, 128
        $region100: #{tpu_custom_call.1} parent=95 // pred_fallthru
          _
      $region96: #{tpu_custom_call.1} parent=5 // pred_fallthru
        _
    $region6: #{tpu_custom_call.1} parent=1 // loop_footer
      %s31 = sadd.s32 1, %s27
    $region7: #{tpu_custom_call.1} parent=1 // loop_footer_branch
      %26 = sbr.rel target = $region3
    $region8: #{tpu_custom_call.1} parent=1 // loop_exit
      _
    %1914 = vsyncpa [#allocation4], 1
    %s1915 = scalar_lea.sflag [#allocation4], 1
    %1916 = vsyncpa %s1915, 1
    %1917 = vsyncpa [#allocation5], 1
    %s1918 = scalar_lea.sflag [#allocation5], 1
    %1919 = vsyncpa %s1918, 1

</llo_original>
